<compile_context>
chip_gen: v6e
topology: v6e:2x2x1
jax: 0.10.0
libtpu: 0.0.40
codegen_flags: <defaults>
</compile_context>

<pallas_src>
import functools

import jax
import jax.numpy as jnp
from jax.experimental import pallas as pl
from jax.experimental.pallas import tpu as pltpu


def _round_up(n, m):
    return ((n + m - 1) // m) * m


def policy_kernel(xn_ref, w1_ref, b1_ref, w2_ref, b2_ref, wh_ref, bh_ref,
                  out_ref, *, state_dim, action_dim, min_log_std, max_log_std,
                  matmul_dtype):
    # f32 matmuls (parity/testing path) use HIGHEST so the multi-pass MXU
    # lowering is truly f32-accurate; bf16 inputs are single-pass anyway.
    f32_inputs = jnp.dtype(matmul_dtype) == jnp.dtype(jnp.float32)
    precision = jax.lax.Precision.HIGHEST if f32_inputs else None

    # Single streamed tile holds [x | noise]; only x feeds the MXU.
    x = xn_ref[:, :state_dim].astype(matmul_dtype)
    noise = xn_ref[:, state_dim:]

    # fc1 + relu    (weights already in matmul_dtype — cast host-side)
    h1 = jnp.dot(x, w1_ref[...], preferred_element_type=jnp.float32,
                 precision=precision) + b1_ref[...]
    h1 = jnp.maximum(h1, 0.0)

    # fc2 + relu
    h2 = jnp.dot(h1.astype(matmul_dtype), w2_ref[...],
                 preferred_element_type=jnp.float32,
                 precision=precision) + b2_ref[...]
    h2 = jnp.maximum(h2, 0.0)

    # fused heads: one MXU matmul producing [mu_raw | log_std_raw] columns
    heads = jnp.dot(h2.astype(matmul_dtype), wh_ref[...],
                    preferred_element_type=jnp.float32,
                    precision=precision) + bh_ref[...]

    mu = jnp.tanh(heads[:, :action_dim])
    ls = jnp.clip(heads[:, action_dim:], min_log_std, max_log_std)
    std = jnp.exp(0.5 * ls)                     # == sqrt(exp(ls)), one EUP op

    act = jnp.clip(mu + std * noise, -1.0, 1.0)

    # single packed store: [mu | std | act]
    out_ref[...] = jnp.concatenate([mu, std, act], axis=-1)


def policy_forward(x, params, noise, *, min_log_std=-10.0, max_log_std=10.0,
                   tile_b=1024, matmul_dtype=jnp.bfloat16):
    """Fused Pallas forward. Tiles over batch; weights stay VMEM-resident."""
    batch, state_dim = x.shape
    hidden = params["w1"].shape[1]
    action_dim = params["wmu"].shape[1]
    w_itemsize = jnp.dtype(matmul_dtype).itemsize

    # Host-side prep:
    #  * fuse the two head matmuls into one (hidden, 2A) weight,
    #  * cast matmul weights to matmul_dtype once (MXU is bf16-native on
    #    v5e/v6e/v7x; halves resident-weight DMA/VMEM; removes per-step casts),
    #  * keep biases and the streamed [x|noise] slab in f32 (noise precision
    #    and f32 accumulate+bias add are preserved).
    w1 = params["w1"].astype(matmul_dtype)
    w2 = params["w2"].astype(matmul_dtype)
    w_heads = jnp.concatenate([params["wmu"], params["wls"]],
                              axis=1).astype(matmul_dtype)
    b1 = params["b1"].astype(jnp.float32)
    b2 = params["b2"].astype(jnp.float32)
    b_heads = jnp.concatenate([params["bmu"], params["bls"]],
                              axis=1).astype(jnp.float32)
    xn = jnp.concatenate([x, noise], axis=1).astype(jnp.float32)

    # Batch tiling: multiple of 8 sublanes; <=2048 rows keeps the streamed
    # tiles (lane-padded to 128) + double buffering well under the scoped-VMEM
    # default on every generation (v5e 16 MiB, v6e/v7x 32 MiB).
    tb = _round_up(max(1, min(tile_b, 2048, batch)), 8)
    padded = _round_up(batch, tb)
    # v7x has 2 TensorCores: guarantee >=2 "parallel" grid steps when there is
    # enough work so both cores get a shard (no-op for single-TC v5e/v6e).
    if padded // tb < 2 and padded >= 16:
        tb = _round_up(pl.cdiv(padded, 2), 8)
        padded = _round_up(batch, tb)
    if padded != batch:
        xn = jnp.pad(xn, ((0, padded - batch), (0, 0)))
    grid = (padded // tb,)

    kernel = functools.partial(
        policy_kernel, state_dim=state_dim, action_dim=action_dim,
        min_log_std=min_log_std, max_log_std=max_log_std,
        matmul_dtype=matmul_dtype)

    def streamed(ncols):                       # tiled over batch
        return pl.BlockSpec((tb, ncols), lambda i: (i, 0))

    def resident(shape):                       # VMEM-resident across steps
        return pl.BlockSpec(shape, lambda i: (0, 0))

    flops = 2 * padded * (state_dim * hidden + hidden * hidden
                          + hidden * 2 * action_dim)
    transcendentals = 2 * padded * action_dim               # tanh + exp
    bytes_accessed = (4 * xn.size
                      + w_itemsize * (w1.size + w2.size + w_heads.size)
                      + 4 * (b1.size + b2.size + b_heads.size)
                      + 4 * padded * 3 * action_dim)

    packed = pl.pallas_call(
        kernel,
        out_shape=jax.ShapeDtypeStruct((padded, 3 * action_dim), jnp.float32),
        grid=grid,
        in_specs=[
            streamed(state_dim + action_dim),       # [x | noise] (streamed)
            resident((state_dim, hidden)),          # w1 (VMEM resident, bf16)
            resident((1, hidden)),                  # b1 (f32)
            resident((hidden, hidden)),             # w2
            resident((1, hidden)),                  # b2
            resident((hidden, 2 * action_dim)),     # fused head weight
            resident((1, 2 * action_dim)),          # fused head bias
        ],
        out_specs=streamed(3 * action_dim),         # packed [mu|std|act]
        compiler_params=pltpu.CompilerParams(
            dimension_semantics=("parallel",)),
        cost_estimate=pl.CostEstimate(
            flops=flops, transcendentals=transcendentals,
            bytes_accessed=bytes_accessed),
    )(xn, w1, b1, w2, b2, w_heads, b_heads)

    mu = packed[:batch, :action_dim]
    std = packed[:batch, action_dim:2 * action_dim]
    act = packed[:batch, 2 * action_dim:]
    return mu, std, act


def init_params(key, state_dim, hidden, action_dim):
    """Matches PyTorch Linear default init: U(-1/sqrt(fan_in), 1/sqrt(fan_in))."""
    def linear(k, fan_in, fan_out):
        kw, kb = jax.random.split(k)
        bound = 1.0 / jnp.sqrt(fan_in)
        w = jax.random.uniform(kw, (fan_in, fan_out), jnp.float32, -bound, bound)
        b = jax.random.uniform(kb, (1, fan_out), jnp.float32, -bound, bound)
        return w, b

    k1, k2, k3, k4 = jax.random.split(key, 4)
    w1, b1 = linear(k1, state_dim, hidden)
    w2, b2 = linear(k2, hidden, hidden)
    wmu, bmu = linear(k3, hidden, action_dim)
    wls, bls = linear(k4, hidden, action_dim)
    return {"w1": w1, "b1": b1, "w2": w2, "b2": b2,
            "wmu": wmu, "bmu": bmu, "wls": wls, "bls": bls}


if __name__ == "__main__":
    # Small deterministic test shapes (module implies state->hidden->action MLP).
    batch, state_dim, hidden, action_dim = 16, 16, 32, 8

    key = jax.random.PRNGKey(0)
    kp, kx, kn = jax.random.split(key, 3)

    params = init_params(kp, state_dim, hidden, action_dim)
    x = jax.random.normal(kx, (batch, state_dim), jnp.float32)
    # torch.randn_like(mu): Gaussian noise generated outside the kernel.
    noise = jax.random.normal(kn, (batch, action_dim), jnp.float32)

    # Pure-JAX f32 reference (original torch formulation: sqrt(exp(clamp(.)))).
    h1 = jnp.maximum(x @ params["w1"] + params["b1"], 0.0)
    h2 = jnp.maximum(h1 @ params["w2"] + params["b2"], 0.0)
    mu_ref = jnp.tanh(h2 @ params["wmu"] + params["bmu"])
    std_ref = jnp.sqrt(jnp.exp(jnp.clip(h2 @ params["wls"] + params["bls"],
                                        -10.0, 10.0)))
    act_ref = jnp.clip(mu_ref + std_ref * noise, -1.0, 1.0)

    # 1) Exact-parity path: f32 matmul inputs.
    mu32, std32, act32 = policy_forward(x, params, noise,
                                        matmul_dtype=jnp.float32)
    jax.block_until_ready((mu32, std32, act32))
    assert mu32.shape == (batch, action_dim)
    assert std32.shape == (batch, action_dim)
    assert act32.shape == (batch, action_dim)
    assert jnp.allclose(mu32, mu_ref, atol=1e-4)
    assert jnp.allclose(std32, std_ref, atol=1e-4)
    assert jnp.allclose(act32, act_ref, atol=1e-4)

    # 2) Production default: bf16 matmul inputs, f32 accumulation.
    mu, std, act = policy_forward(x, params, noise)
    jax.block_until_ready((mu, std, act))
    assert jnp.allclose(mu, mu_ref, atol=5e-2, rtol=5e-2)
    assert jnp.allclose(std, std_ref, atol=5e-2, rtol=5e-2)
    assert jnp.allclose(act, act_ref, atol=5e-2, rtol=5e-2)

    print("KERNEL_OK")
</pallas_src>

<mosaic_0001>
module attributes {stable_mosaic.version = 11 : i64} {
  func.func @policy_kernel(%arg0: i32, %arg1: memref<8x24xf32, #tpu.memory_space<vmem>>, %arg2: memref<16x32xf32, #tpu.memory_space<vmem>>, %arg3: memref<1x32xf32, #tpu.memory_space<vmem>>, %arg4: memref<32x32xf32, #tpu.memory_space<vmem>>, %arg5: memref<1x32xf32, #tpu.memory_space<vmem>>, %arg6: memref<32x16xf32, #tpu.memory_space<vmem>>, %arg7: memref<1x16xf32, #tpu.memory_space<vmem>>, %arg8: memref<8x24xf32, #tpu.memory_space<vmem>>) attributes {dimension_semantics = [#tpu.dimension_semantics<parallel>], iteration_bounds = array<i64: 2>, scalar_prefetch = 0 : i64, scratch_operands = 0 : i64, tpu.core_type = #tpu.core_type<tc>, window_params = [{transform_indices = @transform_0, window_bounds = array<i64: 8, 24>}, {pipeline_mode = #tpu.pipeline_mode<synchronous>, transform_indices = @transform_1, window_bounds = array<i64: 16, 32>}, {pipeline_mode = #tpu.pipeline_mode<synchronous>, transform_indices = @transform_2, window_bounds = array<i64: 1, 32>}, {pipeline_mode = #tpu.pipeline_mode<synchronous>, transform_indices = @transform_3, window_bounds = array<i64: 32, 32>}, {pipeline_mode = #tpu.pipeline_mode<synchronous>, transform_indices = @transform_4, window_bounds = array<i64: 1, 32>}, {pipeline_mode = #tpu.pipeline_mode<synchronous>, transform_indices = @transform_5, window_bounds = array<i64: 32, 16>}, {pipeline_mode = #tpu.pipeline_mode<synchronous>, transform_indices = @transform_6, window_bounds = array<i64: 1, 16>}, {transform_indices = @transform_7, window_bounds = array<i64: 8, 24>}]} {
    %c0 = arith.constant 0 : index
    %c0_0 = arith.constant 0 : index
    %0 = vector.load %arg1[%c0, %c0_0] : memref<8x24xf32, #tpu.memory_space<vmem>>, vector<8x16xf32>
    %c0_1 = arith.constant 0 : index
    %c16 = arith.constant 16 : index
    %1 = vector.load %arg1[%c0_1, %c16] : memref<8x24xf32, #tpu.memory_space<vmem>>, vector<8x8xf32>
    %c0_2 = arith.constant 0 : index
    %c0_3 = arith.constant 0 : index
    %2 = vector.load %arg2[%c0_2, %c0_3] : memref<16x32xf32, #tpu.memory_space<vmem>>, vector<16x32xf32>
    %cst = arith.constant dense<0.000000e+00> : vector<8x32xf32>
    %3 = tpu.matmul %0, %2, %cst {dimension_numbers = #tpu.dot_dimension_numbers<[1], [0], [0], [1], [0, 0, 1, 1], [], []>, precision = #tpu.contract_precision<fp32>} : vector<8x16xf32>, vector<16x32xf32>, vector<8x32xf32> -> vector<8x32xf32>
    %c0_4 = arith.constant 0 : index
    %c0_5 = arith.constant 0 : index
    %4 = vector.load %arg3[%c0_4, %c0_5] : memref<1x32xf32, #tpu.memory_space<vmem>>, vector<1x32xf32>
    %5 = vector.broadcast %4 : vector<1x32xf32> to vector<8x32xf32>
    %6 = arith.addf %3, %5 : vector<8x32xf32>
    %cst_6 = arith.constant 0.000000e+00 : f32
    %7 = vector.broadcast %cst_6 : f32 to vector<8x32xf32>
    %8 = arith.maximumf %6, %7 : vector<8x32xf32>
    %c0_7 = arith.constant 0 : index
    %c0_8 = arith.constant 0 : index
    %9 = vector.load %arg4[%c0_7, %c0_8] : memref<32x32xf32, #tpu.memory_space<vmem>>, vector<32x32xf32>
    %cst_9 = arith.constant dense<0.000000e+00> : vector<8x32xf32>
    %10 = tpu.matmul %8, %9, %cst_9 {dimension_numbers = #tpu.dot_dimension_numbers<[1], [0], [0], [1], [0, 0, 1, 1], [], []>, precision = #tpu.contract_precision<fp32>} : vector<8x32xf32>, vector<32x32xf32>, vector<8x32xf32> -> vector<8x32xf32>
    %c0_10 = arith.constant 0 : index
    %c0_11 = arith.constant 0 : index
    %11 = vector.load %arg5[%c0_10, %c0_11] : memref<1x32xf32, #tpu.memory_space<vmem>>, vector<1x32xf32>
    %12 = vector.broadcast %11 : vector<1x32xf32> to vector<8x32xf32>
    %13 = arith.addf %10, %12 : vector<8x32xf32>
    %cst_12 = arith.constant 0.000000e+00 : f32
    %14 = vector.broadcast %cst_12 : f32 to vector<8x32xf32>
    %15 = arith.maximumf %13, %14 : vector<8x32xf32>
    %c0_13 = arith.constant 0 : index
    %c0_14 = arith.constant 0 : index
    %16 = vector.load %arg6[%c0_13, %c0_14] : memref<32x16xf32, #tpu.memory_space<vmem>>, vector<32x16xf32>
    %cst_15 = arith.constant dense<0.000000e+00> : vector<8x16xf32>
    %17 = tpu.matmul %15, %16, %cst_15 {dimension_numbers = #tpu.dot_dimension_numbers<[1], [0], [0], [1], [0, 0, 1, 1], [], []>, precision = #tpu.contract_precision<fp32>} : vector<8x32xf32>, vector<32x16xf32>, vector<8x16xf32> -> vector<8x16xf32>
    %c0_16 = arith.constant 0 : index
    %c0_17 = arith.constant 0 : index
    %18 = vector.load %arg7[%c0_16, %c0_17] : memref<1x16xf32, #tpu.memory_space<vmem>>, vector<1x16xf32>
    %19 = vector.broadcast %18 : vector<1x16xf32> to vector<8x16xf32>
    %20 = arith.addf %17, %19 : vector<8x16xf32>
    %21 = vector.extract_strided_slice %20 {offsets = [0, 0], sizes = [8, 8], strides = [1, 1]} : vector<8x16xf32> to vector<8x8xf32>
    %22 = math.tanh %21 : vector<8x8xf32>
    %23 = vector.extract_strided_slice %20 {offsets = [0, 8], sizes = [8, 8], strides = [1, 1]} : vector<8x16xf32> to vector<8x8xf32>
    %cst_18 = arith.constant -1.000000e+01 : f32
    %cst_19 = arith.constant 1.000000e+01 : f32
    %24 = vector.broadcast %cst_18 : f32 to vector<8x8xf32>
    %25 = arith.maximumf %24, %23 : vector<8x8xf32>
    %26 = vector.broadcast %cst_19 : f32 to vector<8x8xf32>
    %27 = arith.minimumf %26, %25 : vector<8x8xf32>
    %cst_20 = arith.constant 5.000000e-01 : f32
    %28 = vector.broadcast %cst_20 : f32 to vector<8x8xf32>
    %29 = arith.mulf %28, %27 : vector<8x8xf32>
    %30 = math.exp %29 : vector<8x8xf32>
    %31 = arith.mulf %30, %1 : vector<8x8xf32>
    %32 = arith.addf %22, %31 : vector<8x8xf32>
    %cst_21 = arith.constant -1.000000e+00 : f32
    %cst_22 = arith.constant 1.000000e+00 : f32
    %33 = vector.broadcast %cst_21 : f32 to vector<8x8xf32>
    %34 = arith.maximumf %33, %32 : vector<8x8xf32>
    %35 = vector.broadcast %cst_22 : f32 to vector<8x8xf32>
    %36 = arith.minimumf %35, %34 : vector<8x8xf32>
    %37 = tpu.concatenate %22, %30, %36 in 1 : vector<8x8xf32>, vector<8x8xf32>, vector<8x8xf32> -> vector<8x24xf32>
    %c0_23 = arith.constant 0 : index
    %c0_24 = arith.constant 0 : index
    %38 = vector.load %arg8[%c0_23, %c0_24] : memref<8x24xf32, #tpu.memory_space<vmem>>, vector<8x24xf32>
    tpu.vector_store %arg8[%c0_23, %c0_24], %37 {strides = array<i32>} : memref<8x24xf32, #tpu.memory_space<vmem>>, vector<8x24xf32>,
    return
  }
  func.func @transform_0(%arg0: i32) -> (i32, i32) {
    %c0_i32 = arith.constant 0 : i32
    %c0_i32_0 = arith.constant 0 : i32
    return %arg0, %c0_i32 : i32, i32
  }
  func.func @transform_1(%arg0: i32) -> (i32, i32) {
    %c0_i32 = arith.constant 0 : i32
    %c0_i32_0 = arith.constant 0 : i32
    %c0_i32_1 = arith.constant 0 : i32
    return %c0_i32, %c0_i32_0 : i32, i32
  }
  func.func @transform_2(%arg0: i32) -> (i32, i32) {
    %c0_i32 = arith.constant 0 : i32
    %c0_i32_0 = arith.constant 0 : i32
    %c0_i32_1 = arith.constant 0 : i32
    return %c0_i32, %c0_i32_0 : i32, i32
  }
  func.func @transform_3(%arg0: i32) -> (i32, i32) {
    %c0_i32 = arith.constant 0 : i32
    %c0_i32_0 = arith.constant 0 : i32
    %c0_i32_1 = arith.constant 0 : i32
    return %c0_i32, %c0_i32_0 : i32, i32
  }
  func.func @transform_4(%arg0: i32) -> (i32, i32) {
    %c0_i32 = arith.constant 0 : i32
    %c0_i32_0 = arith.constant 0 : i32
    %c0_i32_1 = arith.constant 0 : i32
    return %c0_i32, %c0_i32_0 : i32, i32
  }
  func.func @transform_5(%arg0: i32) -> (i32, i32) {
    %c0_i32 = arith.constant 0 : i32
    %c0_i32_0 = arith.constant 0 : i32
    %c0_i32_1 = arith.constant 0 : i32
    return %c0_i32, %c0_i32_0 : i32, i32
  }
  func.func @transform_6(%arg0: i32) -> (i32, i32) {
    %c0_i32 = arith.constant 0 : i32
    %c0_i32_0 = arith.constant 0 : i32
    %c0_i32_1 = arith.constant 0 : i32
    return %c0_i32, %c0_i32_0 : i32, i32
  }
  func.func @transform_7(%arg0: i32) -> (i32, i32) {
    %c0_i32 = arith.constant 0 : i32
    %c0_i32_0 = arith.constant 0 : i32
    return %arg0, %c0_i32 : i32, i32
  }
}

</mosaic_0001>

<llo_original>
// kernel: tpu_custom_call.1
$region0: #{tpu_custom_call.1}
  #allocation0 [shape = 'u32[]', space=smem, size = 0x4, offset = 0x4, fixed_abs, tag = 'smem constant byte address 0x4 - core index']
  #allocation1 [shape = 'u32[144,128]{1,0:T(1,128)}', space=vmem, size = 0x12000, scoped, tag = 'internal scratch']
  %s0 = inlined_call_operand.vmem [shape: f32[16,24], index: 0, kind: input, shape index: {}]
  %s1 = inlined_call_operand.hbm [shape: f32[16,32], index: 1, kind: input, shape index: {}]
  %s2 = inlined_call_operand.vmem [shape: f32[1,32], index: 2, kind: input, shape index: {}]
  %s3 = inlined_call_operand.vmem [shape: f32[32,32], index: 3, kind: input, shape index: {}]
  %s4 = inlined_call_operand.vmem [shape: f32[1,32], index: 4, kind: input, shape index: {}]
  %s5 = inlined_call_operand.vmem [shape: f32[32,16], index: 5, kind: input, shape index: {}]
  %s6 = inlined_call_operand.vmem [shape: f32[1,16], index: 6, kind: input, shape index: {}]
  %s7 = inlined_call_operand.hbm [shape: f32[16,24], index: 7, kind: output, shape index: {}]
  %s8 = sld [smem:[#allocation0]]
  $region65: #{tpu_custom_call.1} parent=0
    _
  %s10 = ssub.s32 1, %s8
  %s11 = scalar_select 0, %s10, %s8
  $region1: #{tpu_custom_call.1} parent=0
    #allocation2 [shape = 'u8[8192]{0}', space=vmem, size = 0x2000, scoped, tag = 'input window, operand 1, single buffered']
    #allocation3 [shape = 's32[2]{0}', space=sflag, size = 0x8, scoped, tag = 'scoped memory for tpu_custom_call.1']
    #allocation4 [shape = 's32[2]{0}', space=sflag, size = 0x8, scoped, tag = 'scoped memory for tpu_custom_call.1']
    #allocation5 [shape = 'u8[8192]{0}', space=vmem, size = 0x2000, scoped, tag = 'output window, operand 0']
    %12 = vsyncpa [#allocation3], 0
    %13 = vsyncpa [#allocation4], 0
    %s14 = scalar_lea.sflag [#allocation4], 1
    %15 = vsyncpa %s14, 0
    loop: start=0, step=1, limit=4
    $region2: #{tpu_custom_call.1} parent=1 // loop_pre_header
      _
    $region3: #{tpu_custom_call.1} parent=1 // loop_header
      %s17 = sphi 0, %s21
      %p18 = scmp.ge.s32.totalorder %s17, 4
      %s27 = sphi 0, %s29
      %s30 = sphi 0, %s27
      %s31 = sphi 0, %s30
      %s47 = sphi 0, %s31
      %s51 = sphi 0, %s51
      %s53 = sphi 0, %s51
      %s54 = sphi 0, %s53
      %s68 = sphi 0, %s54
      %s72 = sphi 0, %s72
      %s74 = sphi 0, %s72
      %s75 = sphi 0, %s74
      %s89 = sphi 0, %s75
      %s93 = sphi 0, %s93
      %s95 = sphi 0, %s93
      %s96 = sphi 0, %s95
      %s110 = sphi 0, %s96
      %s114 = sphi 0, %s114
      %s116 = sphi 0, %s114
      %s117 = sphi 0, %s116
      %s131 = sphi 0, %s117
      %s135 = sphi 0, %s135
      %s137 = sphi 0, %s135
      %s138 = sphi 0, %s137
      %s152 = sphi 0, %s138
      %s156 = sphi 0, %s156
      %s158 = sphi 0, %s156
      %s159 = sphi 0, %s158
      %s173 = sphi 0, %s159
      %s179 = sphi 0, %s181
      %s182 = sphi 0, %s179
      %s183 = sphi 0, %s182
      %s199 = sphi 0, %s183
    $region4: #{tpu_custom_call.1} parent=1 // loop_header_branch
      %20 = sbr.rel (%p18) target = $region8
    $region5: #{tpu_custom_call.1} parent=1 // loop_body
      %s22 = ssub.s32 %s17, 1
      %s23 = ssub.s32 %s17, 2
      %s24 = sadd.s32 %s17, 1
      %s25 = ssub.s32 %s17, %s24
      %p26 = scmp.eq.s32.totalorder %s25, 0
      %s28 = sadd.s32 %s27, 1
      %s29 = scalar_select %p26, %s27, %s28
      %p32 = pneg %p26
      %p33 = scmp.eq.s32.totalorder %s17, 1
      %p34 = por %p32, %p33
      %p35 = scmp.ne.s32.totalorder %s27, %s30
      %p36 = scmp.eq.s32.totalorder %s17, 0
      %p37 = por %p35, %p36
      %p38 = scmp.ne.s32.totalorder %s27, %s30
      %p39 = scmp.eq.s32.totalorder %s22, 1
      %p40 = por %p38, %p39
      %p41 = scmp.ne.s32.totalorder %s30, %s31
      %p42 = scmp.eq.s32.totalorder %s22, 0
      %p43 = por %p41, %p42
      %p44 = scmp.ne.s32.totalorder %s30, %s31
      %p45 = scmp.eq.s32.totalorder %s23, 1
      %p46 = por %p44, %p45
      %p48 = scmp.ne.s32.totalorder %s31, %s47
      %p49 = scmp.eq.s32.totalorder %s23, 0
      %p50 = por %p48, %p49
      %s52 = sadd.s32 %s51, 1
      %p55 = scmp.eq.s32.totalorder %s17, 1
      %p56 = scmp.ne.s32.totalorder %s51, %s53
      %p57 = scmp.eq.s32.totalorder %s17, 0
      %p58 = por %p56, %p57
      %p59 = scmp.ne.s32.totalorder %s51, %s53
      %p60 = scmp.eq.s32.totalorder %s22, 1
      %p61 = por %p59, %p60
      %p62 = scmp.ne.s32.totalorder %s53, %s54
      %p63 = scmp.eq.s32.totalorder %s22, 0
      %p64 = por %p62, %p63
      %p65 = scmp.ne.s32.totalorder %s53, %s54
      %p66 = scmp.eq.s32.totalorder %s23, 1
      %p67 = por %p65, %p66
      %p69 = scmp.ne.s32.totalorder %s54, %s68
      %p70 = scmp.eq.s32.totalorder %s23, 0
      %p71 = por %p69, %p70
      %s73 = sadd.s32 %s72, 1
      %p76 = scmp.eq.s32.totalorder %s17, 1
      %p77 = scmp.ne.s32.totalorder %s72, %s74
      %p78 = scmp.eq.s32.totalorder %s17, 0
      %p79 = por %p77, %p78
      %p80 = scmp.ne.s32.totalorder %s72, %s74
      %p81 = scmp.eq.s32.totalorder %s22, 1
      %p82 = por %p80, %p81
      %p83 = scmp.ne.s32.totalorder %s74, %s75
      %p84 = scmp.eq.s32.totalorder %s22, 0
      %p85 = por %p83, %p84
      %p86 = scmp.ne.s32.totalorder %s74, %s75
      %p87 = scmp.eq.s32.totalorder %s23, 1
      %p88 = por %p86, %p87
      %p90 = scmp.ne.s32.totalorder %s75, %s89
      %p91 = scmp.eq.s32.totalorder %s23, 0
      %p92 = por %p90, %p91
      %s94 = sadd.s32 %s93, 1
      %p97 = scmp.eq.s32.totalorder %s17, 1
      %p98 = scmp.ne.s32.totalorder %s93, %s95
      %p99 = scmp.eq.s32.totalorder %s17, 0
      %p100 = por %p98, %p99
      %p101 = scmp.ne.s32.totalorder %s93, %s95
      %p102 = scmp.eq.s32.totalorder %s22, 1
      %p103 = por %p101, %p102
      %p104 = scmp.ne.s32.totalorder %s95, %s96
      %p105 = scmp.eq.s32.totalorder %s22, 0
      %p106 = por %p104, %p105
      %p107 = scmp.ne.s32.totalorder %s95, %s96
      %p108 = scmp.eq.s32.totalorder %s23, 1
      %p109 = por %p107, %p108
      %p111 = scmp.ne.s32.totalorder %s96, %s110
      %p112 = scmp.eq.s32.totalorder %s23, 0
      %p113 = por %p111, %p112
      %s115 = sadd.s32 %s114, 1
      %p118 = scmp.eq.s32.totalorder %s17, 1
      %p119 = scmp.ne.s32.totalorder %s114, %s116
      %p120 = scmp.eq.s32.totalorder %s17, 0
      %p121 = por %p119, %p120
      %p122 = scmp.ne.s32.totalorder %s114, %s116
      %p123 = scmp.eq.s32.totalorder %s22, 1
      %p124 = por %p122, %p123
      %p125 = scmp.ne.s32.totalorder %s116, %s117
      %p126 = scmp.eq.s32.totalorder %s22, 0
      %p127 = por %p125, %p126
      %p128 = scmp.ne.s32.totalorder %s116, %s117
      %p129 = scmp.eq.s32.totalorder %s23, 1
      %p130 = por %p128, %p129
      %p132 = scmp.ne.s32.totalorder %s117, %s131
      %p133 = scmp.eq.s32.totalorder %s23, 0
      %p134 = por %p132, %p133
      %s136 = sadd.s32 %s135, 1
      %p139 = scmp.eq.s32.totalorder %s17, 1
      %p140 = scmp.ne.s32.totalorder %s135, %s137
      %p141 = scmp.eq.s32.totalorder %s17, 0
      %p142 = por %p140, %p141
      %p143 = scmp.ne.s32.totalorder %s135, %s137
      %p144 = scmp.eq.s32.totalorder %s22, 1
      %p145 = por %p143, %p144
      %p146 = scmp.ne.s32.totalorder %s137, %s138
      %p147 = scmp.eq.s32.totalorder %s22, 0
      %p148 = por %p146, %p147
      %p149 = scmp.ne.s32.totalorder %s137, %s138
      %p150 = scmp.eq.s32.totalorder %s23, 1
      %p151 = por %p149, %p150
      %p153 = scmp.ne.s32.totalorder %s138, %s152
      %p154 = scmp.eq.s32.totalorder %s23, 0
      %p155 = por %p153, %p154
      %s157 = sadd.s32 %s156, 1
      %p160 = scmp.eq.s32.totalorder %s17, 1
      %p161 = scmp.ne.s32.totalorder %s156, %s158
      %p162 = scmp.eq.s32.totalorder %s17, 0
      %p163 = por %p161, %p162
      %p164 = scmp.ne.s32.totalorder %s156, %s158
      %p165 = scmp.eq.s32.totalorder %s22, 1
      %p166 = por %p164, %p165
      %p167 = scmp.ne.s32.totalorder %s158, %s159
      %p168 = scmp.eq.s32.totalorder %s22, 0
      %p169 = por %p167, %p168
      %p170 = scmp.ne.s32.totalorder %s158, %s159
      %p171 = scmp.eq.s32.totalorder %s23, 1
      %p172 = por %p170, %p171
      %p174 = scmp.ne.s32.totalorder %s159, %s173
      %p175 = scmp.eq.s32.totalorder %s23, 0
      %p176 = por %p174, %p175
      %s177 = ssub.s32 %s17, %s24
      %p178 = scmp.eq.s32.totalorder %s177, 0
      %s180 = sadd.s32 %s179, 1
      %s181 = scalar_select %p178, %s179, %s180
      %p184 = pneg %p178
      %p185 = scmp.eq.s32.totalorder %s17, 1
      %p186 = por %p184, %p185
      %p187 = scmp.ne.s32.totalorder %s179, %s182
      %p188 = scmp.eq.s32.totalorder %s17, 0
      %p189 = por %p187, %p188
      %p190 = scmp.ne.s32.totalorder %s179, %s182
      %p191 = scmp.eq.s32.totalorder %s22, 1
      %p192 = por %p190, %p191
      %p193 = scmp.ne.s32.totalorder %s182, %s183
      %p194 = scmp.eq.s32.totalorder %s22, 0
      %p195 = por %p193, %p194
      %p196 = scmp.ne.s32.totalorder %s182, %s183
      %p197 = scmp.eq.s32.totalorder %s23, 1
      %p198 = por %p196, %p197
      %p200 = scmp.ne.s32.totalorder %s183, %s199
      %p201 = scmp.eq.s32.totalorder %s23, 0
      %p202 = por %p200, %p201
      %p203 = scmp.le.s32.totalorder 1, %s17
      %p204 = scmp.lt.s32.totalorder %s17, 3
      %p205 = pnand %p203, %p204
      %p206 = pneg %p205
      // Predicated region
      $region9: #{tpu_custom_call.1} parent=5 // pred_check
        _
      $region10: #{tpu_custom_call.1} parent=5 // pred_check_branch
        %208 = sbr.rel (%p205) target = $region12
      $region11: #{tpu_custom_call.1} parent=5 // pred_region
        %s209 = ssub.s32 %s17, 1
        // Predicated region
        $region13: #{tpu_custom_call.1} parent=11 // pred_check
          %p210 = pneg %p64
        $region14: #{tpu_custom_call.1} parent=11 // pred_check_branch
          %212 = sbr.rel (%p210) target = $region16
        $region15: #{tpu_custom_call.1} parent=11 // pred_region
          %s214 = ssub.s32 256, 256
          %215 = vsyncadd [#allocation3], %s214
          %s216 = sshll.u32 [#allocation2], 4
          %s217 = int_to_ptr.vmem [resolvable:$true] %s216
          %222 = dma.hbm_to_vmem [thread:$0]  %s1, 256, %s217, [#allocation3], 128, 128, 8
        $region16: #{tpu_custom_call.1} parent=11 // pred_fallthru
          _
        // Predicated region
        $region17: #{tpu_custom_call.1} parent=11 // pred_check
          %p223 = pneg %p85
        $region18: #{tpu_custom_call.1} parent=11 // pred_check_branch
          %225 = sbr.rel (%p223) target = $region20
        $region19: #{tpu_custom_call.1} parent=11 // pred_region
          _
        $region20: #{tpu_custom_call.1} parent=11 // pred_fallthru
          _
        // Predicated region
        $region21: #{tpu_custom_call.1} parent=11 // pred_check
          %p226 = pneg %p106
        $region22: #{tpu_custom_call.1} parent=11 // pred_check_branch
          %228 = sbr.rel (%p226) target = $region24
        $region23: #{tpu_custom_call.1} parent=11 // pred_region
          _
        $region24: #{tpu_custom_call.1} parent=11 // pred_fallthru
          _
        // Predicated region
        $region25: #{tpu_custom_call.1} parent=11 // pred_check
          %p229 = pneg %p127
        $region26: #{tpu_custom_call.1} parent=11 // pred_check_branch
          %231 = sbr.rel (%p229) target = $region28
        $region27: #{tpu_custom_call.1} parent=11 // pred_region
          _
        $region28: #{tpu_custom_call.1} parent=11 // pred_fallthru
          _
        // Predicated region
        $region29: #{tpu_custom_call.1} parent=11 // pred_check
          %p232 = pneg %p148
        $region30: #{tpu_custom_call.1} parent=11 // pred_check_branch
          %234 = sbr.rel (%p232) target = $region32
        $region31: #{tpu_custom_call.1} parent=11 // pred_region
          _
        $region32: #{tpu_custom_call.1} parent=11 // pred_fallthru
          _
        // Predicated region
        $region33: #{tpu_custom_call.1} parent=11 // pred_check
          %p235 = pneg %p169
        $region34: #{tpu_custom_call.1} parent=11 // pred_check_branch
          %237 = sbr.rel (%p235) target = $region36
        $region35: #{tpu_custom_call.1} parent=11 // pred_region
          _
        $region36: #{tpu_custom_call.1} parent=11 // pred_fallthru
          _
      $region12: #{tpu_custom_call.1} parent=5 // pred_fallthru
        _
      %p238 = scmp.lt.s32.totalorder %s17, 2
      // Predicated region
      $region37: #{tpu_custom_call.1} parent=5 // pred_check
        %p239 = pneg %p238
      $region38: #{tpu_custom_call.1} parent=5 // pred_check_branch
        %241 = sbr.rel (%p239) target = $region40
      $region39: #{tpu_custom_call.1} parent=5 // pred_region
        // Predicated region
        $region41: #{tpu_custom_call.1} parent=39 // pred_check
          %p242 = pneg %p37
        $region42: #{tpu_custom_call.1} parent=39 // pred_check_branch
          %244 = sbr.rel (%p242) target = $region44
        $region43: #{tpu_custom_call.1} parent=39 // pred_region
          %p245 = scmp.lt.s32.totalorder %s17, 1
          %s246 = scalar_select %p245, %s17, 1
          %s247 = smul.addr %s246, 8
          %s248 = scalar_lea.vmem %s0, %s247
        $region44: #{tpu_custom_call.1} parent=39 // pred_fallthru
          _
      $region40: #{tpu_custom_call.1} parent=5 // pred_fallthru
        _
      %p249 = scmp.le.s32.totalorder 1, %s17
      %p250 = scmp.lt.s32.totalorder %s17, 3
      %p251 = pnand %p249, %p250
      %p252 = pneg %p251
      // Predicated region
      $region45: #{tpu_custom_call.1} parent=5 // pred_check
        _
      $region46: #{tpu_custom_call.1} parent=5 // pred_check_branch
        %254 = sbr.rel (%p251) target = $region48
      $region47: #{tpu_custom_call.1} parent=5 // pred_region
        %s255 = ssub.s32 %s17, 1
        // Predicated region
        $region49: #{tpu_custom_call.1} parent=47 // pred_check
          %p256 = pneg %p64
        $region50: #{tpu_custom_call.1} parent=47 // pred_check_branch
          %258 = sbr.rel (%p256) target = $region52
        $region51: #{tpu_custom_call.1} parent=47 // pred_region
          %259 = dma.done [#allocation3], 256
        $region52: #{tpu_custom_call.1} parent=47 // pred_fallthru
          _
        %p260 = scmp.lt.s32.totalorder %s22, 1
        %s261 = scalar_select %p260, %s22, 1
        %s262 = smul.addr %s261, 8
        %s263 = scalar_lea.vmem %s0, %s262
        %p264 = pneg %p43
        %p265 = pneg %p40
        %p266 = pneg %p64
        %p267 = pneg %p61
        %p268 = pneg %p85
        %p269 = pneg %p82
        %p270 = pneg %p106
        %p271 = pneg %p103
        %p272 = pneg %p127
        %p273 = pneg %p124
        %p274 = pneg %p148
        %p275 = pneg %p145
        %p276 = pneg %p169
        %p277 = pneg %p166
        %p278 = pneg %p195
        %p279 = pneg %p192
        %s280 = sand.u32 %s182, 1
        %s281 = scalar_lea.sflag [#allocation4], %s280
        %s282 = sand.u32 %s182, 1
        %s283 = smul.addr %s282, 8
        %s284 = scalar_lea.vmem [#allocation5], %s283
        %p285 = scmp.lt.s32.totalorder %s22, 1
        %s286 = scalar_select %p285, %s22, 1
        %s287 = smul.addr %s286, 8
        %s288 = scalar_lea.vmem %s0, %s287
        %v289 = vld [vmem:[%s288] sm:$0xff]
        %v290 = vld [vmem:[#allocation2] sm:$0xff]
        %v291 = vld [vmem:[#allocation2 + $0x8] sm:$0xff]
        %v292 = vld [vmem:[%s2] sm:$0x1]
        %v294 = vlaneseq
        %v295 = vshrl.u32 %v294, 7
        %v296 = vsub.s32 0, %v295
        %v297 = vrot.slane %v292, %v296
        %vm299 = vcmask 130048
        %v301 = vsel %vm299, %v289, 0
        %303 = vmatprep.subr.mxu0 0.0
        %304 = vmatpush1.msra.mxu0 0.0
        %305 = vmatprep.subr.mxu0 0.0
        %306 = vmatpush1.msra.mxu0 0.0
        %307 = vmatprep.subr.mxu0 0.0
        %308 = vmatpush1.msra.mxu0 0.0
        %309 = vmatprep.subr.mxu0 0.0
        %310 = vmatpush1.msra.mxu0 0.0
        %311 = vmatprep.subr.mxu0 0.0
        %312 = vmatpush1.msra.mxu0 0.0
        %313 = vmatprep.subr.mxu0 0.0
        %314 = vmatpush1.msra.mxu0 0.0
        %315 = vmatprep.subr.mxu0 0.0
        %316 = vmatpush1.msra.mxu0 0.0
        %317 = vmatprep.subr.mxu0 0.0
        %318 = vmatpush1.msra.mxu0 0.0
        %319 = vmatprep.subr.mxu0 0.0
        %320 = vmatpush1.msra.mxu0 0.0
        %321 = vmatprep.subr.mxu0 0.0
        %322 = vmatpush1.msra.mxu0 0.0
        %323 = vmatprep.subr.mxu0 0.0
        %324 = vmatpush1.msra.mxu0 0.0
        %325 = vmatprep.subr.mxu0 0.0
        %326 = vmatpush1.msra.mxu0 0.0
        %327 = vmatprep.subr.mxu0 0.0
        %328 = vmatpush1.msra.mxu0 0.0
        %329 = vmatprep.subr.mxu0 0.0
        %330 = vmatpush1.msra.mxu0 0.0
        %331 = vmatprep.subr.mxu0 0.0
        %v332 = vand.u32 %v291, 4294901760
        %333 = vmatpush1.msra.mxu0 %v332
        %334 = vmatprep.subr.mxu0 0.0
        %v335 = vand.u32 %v290, 4294901760
        %336 = vmatpush1.msra.mxu0 %v335
        %337 = vmatprep.subr.mxu0 0.0
        %338 = vmatpush2.msra.mxu0 0.0
        %339 = vmatprep.subr.mxu0 0.0
        %340 = vmatpush2.msra.mxu0 0.0
        %341 = vmatprep.subr.mxu0 0.0
        %342 = vmatpush2.msra.mxu0 0.0
        %343 = vmatprep.subr.mxu0 0.0
        %344 = vmatpush2.msra.mxu0 0.0
        %345 = vmatprep.subr.mxu0 0.0
        %346 = vmatpush2.msra.mxu0 0.0
        %347 = vmatprep.subr.mxu0 0.0
        %348 = vmatpush2.msra.mxu0 0.0
        %349 = vmatprep.subr.mxu0 0.0
        %350 = vmatpush2.msra.mxu0 0.0
        %351 = vmatprep.subr.mxu0 0.0
        %352 = vmatpush2.msra.mxu0 0.0
        %353 = vmatprep.subr.mxu0 0.0
        %354 = vmatpush2.msra.mxu0 0.0
        %355 = vmatprep.subr.mxu0 0.0
        %356 = vmatpush2.msra.mxu0 0.0
        %357 = vmatprep.subr.mxu0 0.0
        %358 = vmatpush2.msra.mxu0 0.0
        %359 = vmatprep.subr.mxu0 0.0
        %360 = vmatpush2.msra.mxu0 0.0
        %361 = vmatprep.subr.mxu0 0.0
        %362 = vmatpush2.msra.mxu0 0.0
        %363 = vmatprep.subr.mxu0 0.0
        %364 = vmatpush2.msra.mxu0 0.0
        %365 = vmatprep.subr.mxu0 0.0
        %366 = vmatpush2.msra.mxu0 0.0
        %367 = vmatprep.subr.mxu0 0.0
        %368 = vmatpush2.msra.mxu0 0.0
        %369 = vmatprep.mubr.f32.mxu0 0.0
        %v370 = vand.u32 %v301, 4294901760
        %v371 = vsub.f32 %v301, %v370
        %v372 = vand.u32 %v371, 4294901760
        %v373 = vsub.f32 %v371, %v372
        %v374 = vand.u32 %v373, 4294901760
        %375 = vmatmul.mubr.f32.gmra.mxu0 %v374
        %v376 = vpop.f32.mrf.mxu0
        %v377 = vadd.f32 %v297, %v376
        %v378 = vpop.f32.mrf.mxu0
        %379 = vdwg.mxu0
        %380 = vmatprep.subr.mxu0 0.0
        %381 = vmatpush1.msra.mxu0 0.0
        %382 = vmatprep.subr.mxu0 0.0
        %383 = vmatpush1.msra.mxu0 0.0
        %384 = vmatprep.subr.mxu0 0.0
        %385 = vmatpush1.msra.mxu0 0.0
        %386 = vmatprep.subr.mxu0 0.0
        %387 = vmatpush1.msra.mxu0 0.0
        %388 = vmatprep.subr.mxu0 0.0
        %389 = vmatpush1.msra.mxu0 0.0
        %390 = vmatprep.subr.mxu0 0.0
        %391 = vmatpush1.msra.mxu0 0.0
        %392 = vmatprep.subr.mxu0 0.0
        %393 = vmatpush1.msra.mxu0 0.0
        %394 = vmatprep.subr.mxu0 0.0
        %395 = vmatpush1.msra.mxu0 0.0
        %396 = vmatprep.subr.mxu0 0.0
        %397 = vmatpush1.msra.mxu0 0.0
        %398 = vmatprep.subr.mxu0 0.0
        %399 = vmatpush1.msra.mxu0 0.0
        %400 = vmatprep.subr.mxu0 0.0
        %401 = vmatpush1.msra.mxu0 0.0
        %402 = vmatprep.subr.mxu0 0.0
        %403 = vmatpush1.msra.mxu0 0.0
        %404 = vmatprep.subr.mxu0 0.0
        %405 = vmatpush1.msra.mxu0 0.0
        %406 = vmatprep.subr.mxu0 0.0
        %407 = vmatpush1.msra.mxu0 0.0
        %408 = vmatprep.subr.mxu0 0.0
        %v409 = vand.u32 %v291, 4294901760
        %v410 = vsub.f32 %v291, %v409
        %v411 = vand.u32 %v410, 4294901760
        %v412 = vsub.f32 %v410, %v411
        %v413 = vand.u32 %v412, 4294901760
        %414 = vmatpush1.msra.mxu0 %v413
        %415 = vmatprep.subr.mxu0 0.0
        %v416 = vand.u32 %v290, 4294901760
        %v417 = vsub.f32 %v290, %v416
        %v418 = vand.u32 %v417, 4294901760
        %v419 = vsub.f32 %v417, %v418
        %v420 = vand.u32 %v419, 4294901760
        %421 = vmatpush1.msra.mxu0 %v420
        %422 = vmatprep.subr.mxu0 0.0
        %423 = vmatpush2.msra.mxu0 0.0
        %424 = vmatprep.subr.mxu0 0.0
        %425 = vmatpush2.msra.mxu0 0.0
        %426 = vmatprep.subr.mxu0 0.0
        %427 = vmatpush2.msra.mxu0 0.0
        %428 = vmatprep.subr.mxu0 0.0
        %429 = vmatpush2.msra.mxu0 0.0
        %430 = vmatprep.subr.mxu0 0.0
        %431 = vmatpush2.msra.mxu0 0.0
        %432 = vmatprep.subr.mxu0 0.0
        %433 = vmatpush2.msra.mxu0 0.0
        %434 = vmatprep.subr.mxu0 0.0
        %435 = vmatpush2.msra.mxu0 0.0
        %436 = vmatprep.subr.mxu0 0.0
        %437 = vmatpush2.msra.mxu0 0.0
        %438 = vmatprep.subr.mxu0 0.0
        %439 = vmatpush2.msra.mxu0 0.0
        %440 = vmatprep.subr.mxu0 0.0
        %441 = vmatpush2.msra.mxu0 0.0
        %442 = vmatprep.subr.mxu0 0.0
        %443 = vmatpush2.msra.mxu0 0.0
        %444 = vmatprep.subr.mxu0 0.0
        %445 = vmatpush2.msra.mxu0 0.0
        %446 = vmatprep.subr.mxu0 0.0
        %447 = vmatpush2.msra.mxu0 0.0
        %448 = vmatprep.subr.mxu0 0.0
        %449 = vmatpush2.msra.mxu0 0.0
        %450 = vmatprep.subr.mxu0 0.0
        %451 = vmatpush2.msra.mxu0 0.0
        %452 = vmatprep.subr.mxu0 0.0
        %453 = vmatpush2.msra.mxu0 0.0
        %454 = vmatprep.mubr.f32.mxu0 0.0
        %v455 = vand.u32 %v301, 4294901760
        %456 = vmatmul.mubr.f32.gmra.mxu0 %v455
        %v457 = vpop.f32.mrf.mxu0
        %v458 = vadd.f32 %v377, %v457
        %v459 = vpop.f32.mrf.mxu0
        %460 = vdwg.mxu0
        %461 = vmatprep.subr.mxu0 0.0
        %462 = vmatpush1.msra.mxu0 0.0
        %463 = vmatprep.subr.mxu0 0.0
        %464 = vmatpush1.msra.mxu0 0.0
        %465 = vmatprep.subr.mxu0 0.0
        %466 = vmatpush1.msra.mxu0 0.0
        %467 = vmatprep.subr.mxu0 0.0
        %468 = vmatpush1.msra.mxu0 0.0
        %469 = vmatprep.subr.mxu0 0.0
        %470 = vmatpush1.msra.mxu0 0.0
        %471 = vmatprep.subr.mxu0 0.0
        %472 = vmatpush1.msra.mxu0 0.0
        %473 = vmatprep.subr.mxu0 0.0
        %474 = vmatpush1.msra.mxu0 0.0
        %475 = vmatprep.subr.mxu0 0.0
        %476 = vmatpush1.msra.mxu0 0.0
        %477 = vmatprep.subr.mxu0 0.0
        %478 = vmatpush1.msra.mxu0 0.0
        %479 = vmatprep.subr.mxu0 0.0
        %480 = vmatpush1.msra.mxu0 0.0
        %481 = vmatprep.subr.mxu0 0.0
        %482 = vmatpush1.msra.mxu0 0.0
        %483 = vmatprep.subr.mxu0 0.0
        %484 = vmatpush1.msra.mxu0 0.0
        %485 = vmatprep.subr.mxu0 0.0
        %486 = vmatpush1.msra.mxu0 0.0
        %487 = vmatprep.subr.mxu0 0.0
        %488 = vmatpush1.msra.mxu0 0.0
        %489 = vmatprep.subr.mxu0 0.0
        %v490 = vand.u32 %v291, 4294901760
        %v491 = vsub.f32 %v291, %v490
        %492 = vmatpush1.msra.mxu0 %v491
        %493 = vmatprep.subr.mxu0 0.0
        %v494 = vand.u32 %v290, 4294901760
        %v495 = vsub.f32 %v290, %v494
        %496 = vmatpush1.msra.mxu0 %v495
        %497 = vmatprep.subr.mxu0 0.0
        %498 = vmatpush2.msra.mxu0 0.0
        %499 = vmatprep.subr.mxu0 0.0
        %500 = vmatpush2.msra.mxu0 0.0
        %501 = vmatprep.subr.mxu0 0.0
        %502 = vmatpush2.msra.mxu0 0.0
        %503 = vmatprep.subr.mxu0 0.0
        %504 = vmatpush2.msra.mxu0 0.0
        %505 = vmatprep.subr.mxu0 0.0
        %506 = vmatpush2.msra.mxu0 0.0
        %507 = vmatprep.subr.mxu0 0.0
        %508 = vmatpush2.msra.mxu0 0.0
        %509 = vmatprep.subr.mxu0 0.0
        %510 = vmatpush2.msra.mxu0 0.0
        %511 = vmatprep.subr.mxu0 0.0
        %512 = vmatpush2.msra.mxu0 0.0
        %513 = vmatprep.subr.mxu0 0.0
        %514 = vmatpush2.msra.mxu0 0.0
        %515 = vmatprep.subr.mxu0 0.0
        %516 = vmatpush2.msra.mxu0 0.0
        %517 = vmatprep.subr.mxu0 0.0
        %518 = vmatpush2.msra.mxu0 0.0
        %519 = vmatprep.subr.mxu0 0.0
        %520 = vmatpush2.msra.mxu0 0.0
        %521 = vmatprep.subr.mxu0 0.0
        %522 = vmatpush2.msra.mxu0 0.0
        %523 = vmatprep.subr.mxu0 0.0
        %524 = vmatpush2.msra.mxu0 0.0
        %525 = vmatprep.subr.mxu0 0.0
        %526 = vmatpush2.msra.mxu0 0.0
        %527 = vmatprep.subr.mxu0 0.0
        %528 = vmatpush2.msra.mxu0 0.0
        %529 = vmatprep.mubr.f32.mxu0 0.0
        %v530 = vand.u32 %v301, 4294901760
        %v531 = vsub.f32 %v301, %v530
        %532 = vmatmul.mubr.f32.gmra.mxu0 %v531
        %v533 = vpop.f32.mrf.mxu0
        %v534 = vadd.f32 %v458, %v533
        %v535 = vpop.f32.mrf.mxu0
        %536 = vdwg.mxu0
        %537 = vmatprep.subr.mxu0 0.0
        %538 = vmatpush1.msra.mxu0 0.0
        %539 = vmatprep.subr.mxu0 0.0
        %540 = vmatpush1.msra.mxu0 0.0
        %541 = vmatprep.subr.mxu0 0.0
        %542 = vmatpush1.msra.mxu0 0.0
        %543 = vmatprep.subr.mxu0 0.0
        %544 = vmatpush1.msra.mxu0 0.0
        %545 = vmatprep.subr.mxu0 0.0
        %546 = vmatpush1.msra.mxu0 0.0
        %547 = vmatprep.subr.mxu0 0.0
        %548 = vmatpush1.msra.mxu0 0.0
        %549 = vmatprep.subr.mxu0 0.0
        %550 = vmatpush1.msra.mxu0 0.0
        %551 = vmatprep.subr.mxu0 0.0
        %552 = vmatpush1.msra.mxu0 0.0
        %553 = vmatprep.subr.mxu0 0.0
        %554 = vmatpush1.msra.mxu0 0.0
        %555 = vmatprep.subr.mxu0 0.0
        %556 = vmatpush1.msra.mxu0 0.0
        %557 = vmatprep.subr.mxu0 0.0
        %558 = vmatpush1.msra.mxu0 0.0
        %559 = vmatprep.subr.mxu0 0.0
        %560 = vmatpush1.msra.mxu0 0.0
        %561 = vmatprep.subr.mxu0 0.0
        %562 = vmatpush1.msra.mxu0 0.0
        %563 = vmatprep.subr.mxu0 0.0
        %564 = vmatpush1.msra.mxu0 0.0
        %565 = vmatprep.subr.mxu0 0.0
        %v566 = vand.u32 %v291, 4294901760
        %567 = vmatpush1.msra.mxu0 %v566
        %568 = vmatprep.subr.mxu0 0.0
        %v569 = vand.u32 %v290, 4294901760
        %570 = vmatpush1.msra.mxu0 %v569
        %571 = vmatprep.subr.mxu0 0.0
        %572 = vmatpush2.msra.mxu0 0.0
        %573 = vmatprep.subr.mxu0 0.0
        %574 = vmatpush2.msra.mxu0 0.0
        %575 = vmatprep.subr.mxu0 0.0
        %576 = vmatpush2.msra.mxu0 0.0
        %577 = vmatprep.subr.mxu0 0.0
        %578 = vmatpush2.msra.mxu0 0.0
        %579 = vmatprep.subr.mxu0 0.0
        %580 = vmatpush2.msra.mxu0 0.0
        %581 = vmatprep.subr.mxu0 0.0
        %582 = vmatpush2.msra.mxu0 0.0
        %583 = vmatprep.subr.mxu0 0.0
        %584 = vmatpush2.msra.mxu0 0.0
        %585 = vmatprep.subr.mxu0 0.0
        %586 = vmatpush2.msra.mxu0 0.0
        %587 = vmatprep.subr.mxu0 0.0
        %588 = vmatpush2.msra.mxu0 0.0
        %589 = vmatprep.subr.mxu0 0.0
        %590 = vmatpush2.msra.mxu0 0.0
        %591 = vmatprep.subr.mxu0 0.0
        %592 = vmatpush2.msra.mxu0 0.0
        %593 = vmatprep.subr.mxu0 0.0
        %594 = vmatpush2.msra.mxu0 0.0
        %595 = vmatprep.subr.mxu0 0.0
        %596 = vmatpush2.msra.mxu0 0.0
        %597 = vmatprep.subr.mxu0 0.0
        %598 = vmatpush2.msra.mxu0 0.0
        %599 = vmatprep.subr.mxu0 0.0
        %600 = vmatpush2.msra.mxu0 0.0
        %601 = vmatprep.subr.mxu0 0.0
        %602 = vmatpush2.msra.mxu0 0.0
        %603 = vmatprep.mubr.f32.mxu0 0.0
        %v604 = vand.u32 %v301, 4294901760
        %v605 = vsub.f32 %v301, %v604
        %v606 = vand.u32 %v605, 4294901760
        %607 = vmatmul.mubr.f32.gmra.mxu0 %v606
        %v608 = vpop.f32.mrf.mxu0
        %v609 = vadd.f32 %v534, %v608
        %v610 = vpop.f32.mrf.mxu0
        %611 = vdwg.mxu0
        %612 = vmatprep.subr.mxu0 0.0
        %613 = vmatpush1.msra.mxu0 0.0
        %614 = vmatprep.subr.mxu0 0.0
        %615 = vmatpush1.msra.mxu0 0.0
        %616 = vmatprep.subr.mxu0 0.0
        %617 = vmatpush1.msra.mxu0 0.0
        %618 = vmatprep.subr.mxu0 0.0
        %619 = vmatpush1.msra.mxu0 0.0
        %620 = vmatprep.subr.mxu0 0.0
        %621 = vmatpush1.msra.mxu0 0.0
        %622 = vmatprep.subr.mxu0 0.0
        %623 = vmatpush1.msra.mxu0 0.0
        %624 = vmatprep.subr.mxu0 0.0
        %625 = vmatpush1.msra.mxu0 0.0
        %626 = vmatprep.subr.mxu0 0.0
        %627 = vmatpush1.msra.mxu0 0.0
        %628 = vmatprep.subr.mxu0 0.0
        %629 = vmatpush1.msra.mxu0 0.0
        %630 = vmatprep.subr.mxu0 0.0
        %631 = vmatpush1.msra.mxu0 0.0
        %632 = vmatprep.subr.mxu0 0.0
        %633 = vmatpush1.msra.mxu0 0.0
        %634 = vmatprep.subr.mxu0 0.0
        %635 = vmatpush1.msra.mxu0 0.0
        %636 = vmatprep.subr.mxu0 0.0
        %637 = vmatpush1.msra.mxu0 0.0
        %638 = vmatprep.subr.mxu0 0.0
        %639 = vmatpush1.msra.mxu0 0.0
        %640 = vmatprep.subr.mxu0 0.0
        %v641 = vand.u32 %v291, 4294901760
        %v642 = vsub.f32 %v291, %v641
        %v643 = vand.u32 %v642, 4294901760
        %644 = vmatpush1.msra.mxu0 %v643
        %645 = vmatprep.subr.mxu0 0.0
        %v646 = vand.u32 %v290, 4294901760
        %v647 = vsub.f32 %v290, %v646
        %v648 = vand.u32 %v647, 4294901760
        %649 = vmatpush1.msra.mxu0 %v648
        %650 = vmatprep.subr.mxu0 0.0
        %651 = vmatpush2.msra.mxu0 0.0
        %652 = vmatprep.subr.mxu0 0.0
        %653 = vmatpush2.msra.mxu0 0.0
        %654 = vmatprep.subr.mxu0 0.0
        %655 = vmatpush2.msra.mxu0 0.0
        %656 = vmatprep.subr.mxu0 0.0
        %657 = vmatpush2.msra.mxu0 0.0
        %658 = vmatprep.subr.mxu0 0.0
        %659 = vmatpush2.msra.mxu0 0.0
        %660 = vmatprep.subr.mxu0 0.0
        %661 = vmatpush2.msra.mxu0 0.0
        %662 = vmatprep.subr.mxu0 0.0
        %663 = vmatpush2.msra.mxu0 0.0
        %664 = vmatprep.subr.mxu0 0.0
        %665 = vmatpush2.msra.mxu0 0.0
        %666 = vmatprep.subr.mxu0 0.0
        %667 = vmatpush2.msra.mxu0 0.0
        %668 = vmatprep.subr.mxu0 0.0
        %669 = vmatpush2.msra.mxu0 0.0
        %670 = vmatprep.subr.mxu0 0.0
        %671 = vmatpush2.msra.mxu0 0.0
        %672 = vmatprep.subr.mxu0 0.0
        %673 = vmatpush2.msra.mxu0 0.0
        %674 = vmatprep.subr.mxu0 0.0
        %675 = vmatpush2.msra.mxu0 0.0
        %676 = vmatprep.subr.mxu0 0.0
        %677 = vmatpush2.msra.mxu0 0.0
        %678 = vmatprep.subr.mxu0 0.0
        %679 = vmatpush2.msra.mxu0 0.0
        %680 = vmatprep.subr.mxu0 0.0
        %681 = vmatpush2.msra.mxu0 0.0
        %682 = vmatprep.mubr.f32.mxu0 0.0
        %v683 = vand.u32 %v301, 4294901760
        %684 = vmatmul.mubr.f32.gmra.mxu0 %v683
        %v685 = vpop.f32.mrf.mxu0
        %v686 = vadd.f32 %v609, %v685
        %v687 = vpop.f32.mrf.mxu0
        %688 = vdwg.mxu0
        %689 = vmatprep.subr.mxu0 0.0
        %690 = vmatpush1.msra.mxu0 0.0
        %691 = vmatprep.subr.mxu0 0.0
        %692 = vmatpush1.msra.mxu0 0.0
        %693 = vmatprep.subr.mxu0 0.0
        %694 = vmatpush1.msra.mxu0 0.0
        %695 = vmatprep.subr.mxu0 0.0
        %696 = vmatpush1.msra.mxu0 0.0
        %697 = vmatprep.subr.mxu0 0.0
        %698 = vmatpush1.msra.mxu0 0.0
        %699 = vmatprep.subr.mxu0 0.0
        %700 = vmatpush1.msra.mxu0 0.0
        %701 = vmatprep.subr.mxu0 0.0
        %702 = vmatpush1.msra.mxu0 0.0
        %703 = vmatprep.subr.mxu0 0.0
        %704 = vmatpush1.msra.mxu0 0.0
        %705 = vmatprep.subr.mxu0 0.0
        %706 = vmatpush1.msra.mxu0 0.0
        %707 = vmatprep.subr.mxu0 0.0
        %708 = vmatpush1.msra.mxu0 0.0
        %709 = vmatprep.subr.mxu0 0.0
        %710 = vmatpush1.msra.mxu0 0.0
        %711 = vmatprep.subr.mxu0 0.0
        %712 = vmatpush1.msra.mxu0 0.0
        %713 = vmatprep.subr.mxu0 0.0
        %714 = vmatpush1.msra.mxu0 0.0
        %715 = vmatprep.subr.mxu0 0.0
        %716 = vmatpush1.msra.mxu0 0.0
        %717 = vmatprep.subr.mxu0 0.0
        %v718 = vand.u32 %v291, 4294901760
        %719 = vmatpush1.msra.mxu0 %v718
        %720 = vmatprep.subr.mxu0 0.0
        %v721 = vand.u32 %v290, 4294901760
        %722 = vmatpush1.msra.mxu0 %v721
        %723 = vmatprep.subr.mxu0 0.0
        %724 = vmatpush2.msra.mxu0 0.0
        %725 = vmatprep.subr.mxu0 0.0
        %726 = vmatpush2.msra.mxu0 0.0
        %727 = vmatprep.subr.mxu0 0.0
        %728 = vmatpush2.msra.mxu0 0.0
        %729 = vmatprep.subr.mxu0 0.0
        %730 = vmatpush2.msra.mxu0 0.0
        %731 = vmatprep.subr.mxu0 0.0
        %732 = vmatpush2.msra.mxu0 0.0
        %733 = vmatprep.subr.mxu0 0.0
        %734 = vmatpush2.msra.mxu0 0.0
        %735 = vmatprep.subr.mxu0 0.0
        %736 = vmatpush2.msra.mxu0 0.0
        %737 = vmatprep.subr.mxu0 0.0
        %738 = vmatpush2.msra.mxu0 0.0
        %739 = vmatprep.subr.mxu0 0.0
        %740 = vmatpush2.msra.mxu0 0.0
        %741 = vmatprep.subr.mxu0 0.0
        %742 = vmatpush2.msra.mxu0 0.0
        %743 = vmatprep.subr.mxu0 0.0
        %744 = vmatpush2.msra.mxu0 0.0
        %745 = vmatprep.subr.mxu0 0.0
        %746 = vmatpush2.msra.mxu0 0.0
        %747 = vmatprep.subr.mxu0 0.0
        %748 = vmatpush2.msra.mxu0 0.0
        %749 = vmatprep.subr.mxu0 0.0
        %750 = vmatpush2.msra.mxu0 0.0
        %751 = vmatprep.subr.mxu0 0.0
        %752 = vmatpush2.msra.mxu0 0.0
        %753 = vmatprep.subr.mxu0 0.0
        %754 = vmatpush2.msra.mxu0 0.0
        %755 = vmatprep.mubr.f32.mxu0 0.0
        %v756 = vand.u32 %v301, 4294901760
        %757 = vmatmul.mubr.f32.gmra.mxu0 %v756
        %v758 = vpop.f32.mrf.mxu0
        %v759 = vadd.f32 %v686, %v758
        %v760 = vpop.f32.mrf.mxu0
        %761 = vdwg.mxu0
        %v762 = vmax.f32 %v759, 0.0
        %v763 = vld [vmem:[%s3] sm:$0xff]
        %v764 = vld [vmem:[%s3 + $0x8] sm:$0xff]
        %v765 = vld [vmem:[%s3 + $0x10] sm:$0xff]
        %v766 = vld [vmem:[%s3 + $0x18] sm:$0xff]
        %v767 = vld [vmem:[%s4] sm:$0x1]
        %v769 = vlaneseq
        %v770 = vshrl.u32 %v769, 7
        %v771 = vsub.s32 0, %v770
        %v772 = vrot.slane %v767, %v771
        %vm774 = vcmask 261120
        %v776 = vsel %vm774, %v762, 0
        %778 = vmatprep.subr.mxu0 0.0
        %779 = vmatpush1.msra.mxu0 0.0
        %780 = vmatprep.subr.mxu0 0.0
        %781 = vmatpush1.msra.mxu0 0.0
        %782 = vmatprep.subr.mxu0 0.0
        %783 = vmatpush1.msra.mxu0 0.0
        %784 = vmatprep.subr.mxu0 0.0
        %785 = vmatpush1.msra.mxu0 0.0
        %786 = vmatprep.subr.mxu0 0.0
        %787 = vmatpush1.msra.mxu0 0.0
        %788 = vmatprep.subr.mxu0 0.0
        %789 = vmatpush1.msra.mxu0 0.0
        %790 = vmatprep.subr.mxu0 0.0
        %791 = vmatpush1.msra.mxu0 0.0
        %792 = vmatprep.subr.mxu0 0.0
        %793 = vmatpush1.msra.mxu0 0.0
        %794 = vmatprep.subr.mxu0 0.0
        %795 = vmatpush1.msra.mxu0 0.0
        %796 = vmatprep.subr.mxu0 0.0
        %797 = vmatpush1.msra.mxu0 0.0
        %798 = vmatprep.subr.mxu0 0.0
        %799 = vmatpush1.msra.mxu0 0.0
        %800 = vmatprep.subr.mxu0 0.0
        %801 = vmatpush1.msra.mxu0 0.0
        %802 = vmatprep.subr.mxu0 0.0
        %v803 = vand.u32 %v766, 4294901760
        %804 = vmatpush1.msra.mxu0 %v803
        %805 = vmatprep.subr.mxu0 0.0
        %v806 = vand.u32 %v765, 4294901760
        %807 = vmatpush1.msra.mxu0 %v806
        %808 = vmatprep.subr.mxu0 0.0
        %v809 = vand.u32 %v764, 4294901760
        %810 = vmatpush1.msra.mxu0 %v809
        %811 = vmatprep.subr.mxu0 0.0
        %v812 = vand.u32 %v763, 4294901760
        %813 = vmatpush1.msra.mxu0 %v812
        %814 = vmatprep.subr.mxu0 0.0
        %815 = vmatpush2.msra.mxu0 0.0
        %816 = vmatprep.subr.mxu0 0.0
        %817 = vmatpush2.msra.mxu0 0.0
        %818 = vmatprep.subr.mxu0 0.0
        %819 = vmatpush2.msra.mxu0 0.0
        %820 = vmatprep.subr.mxu0 0.0
        %821 = vmatpush2.msra.mxu0 0.0
        %822 = vmatprep.subr.mxu0 0.0
        %823 = vmatpush2.msra.mxu0 0.0
        %824 = vmatprep.subr.mxu0 0.0
        %825 = vmatpush2.msra.mxu0 0.0
        %826 = vmatprep.subr.mxu0 0.0
        %827 = vmatpush2.msra.mxu0 0.0
        %828 = vmatprep.subr.mxu0 0.0
        %829 = vmatpush2.msra.mxu0 0.0
        %830 = vmatprep.subr.mxu0 0.0
        %831 = vmatpush2.msra.mxu0 0.0
        %832 = vmatprep.subr.mxu0 0.0
        %833 = vmatpush2.msra.mxu0 0.0
        %834 = vmatprep.subr.mxu0 0.0
        %835 = vmatpush2.msra.mxu0 0.0
        %836 = vmatprep.subr.mxu0 0.0
        %837 = vmatpush2.msra.mxu0 0.0
        %838 = vmatprep.subr.mxu0 0.0
        %839 = vmatpush2.msra.mxu0 0.0
        %840 = vmatprep.subr.mxu0 0.0
        %841 = vmatpush2.msra.mxu0 0.0
        %842 = vmatprep.subr.mxu0 0.0
        %843 = vmatpush2.msra.mxu0 0.0
        %844 = vmatprep.subr.mxu0 0.0
        %845 = vmatpush2.msra.mxu0 0.0
        %846 = vmatprep.mubr.f32.mxu0 0.0
        %v847 = vand.u32 %v776, 4294901760
        %v848 = vsub.f32 %v776, %v847
        %v849 = vand.u32 %v848, 4294901760
        %v850 = vsub.f32 %v848, %v849
        %v851 = vand.u32 %v850, 4294901760
        %852 = vmatmul.mubr.f32.gmra.mxu0 %v851
        %v853 = vpop.f32.mrf.mxu0
        %v854 = vadd.f32 %v772, %v853
        %v855 = vpop.f32.mrf.mxu0
        %856 = vdwg.mxu0
        %857 = vmatprep.subr.mxu0 0.0
        %858 = vmatpush1.msra.mxu0 0.0
        %859 = vmatprep.subr.mxu0 0.0
        %860 = vmatpush1.msra.mxu0 0.0
        %861 = vmatprep.subr.mxu0 0.0
        %862 = vmatpush1.msra.mxu0 0.0
        %863 = vmatprep.subr.mxu0 0.0
        %864 = vmatpush1.msra.mxu0 0.0
        %865 = vmatprep.subr.mxu0 0.0
        %866 = vmatpush1.msra.mxu0 0.0
        %867 = vmatprep.subr.mxu0 0.0
        %868 = vmatpush1.msra.mxu0 0.0
        %869 = vmatprep.subr.mxu0 0.0
        %870 = vmatpush1.msra.mxu0 0.0
        %871 = vmatprep.subr.mxu0 0.0
        %872 = vmatpush1.msra.mxu0 0.0
        %873 = vmatprep.subr.mxu0 0.0
        %874 = vmatpush1.msra.mxu0 0.0
        %875 = vmatprep.subr.mxu0 0.0
        %876 = vmatpush1.msra.mxu0 0.0
        %877 = vmatprep.subr.mxu0 0.0
        %878 = vmatpush1.msra.mxu0 0.0
        %879 = vmatprep.subr.mxu0 0.0
        %880 = vmatpush1.msra.mxu0 0.0
        %881 = vmatprep.subr.mxu0 0.0
        %v882 = vand.u32 %v766, 4294901760
        %v883 = vsub.f32 %v766, %v882
        %v884 = vand.u32 %v883, 4294901760
        %v885 = vsub.f32 %v883, %v884
        %v886 = vand.u32 %v885, 4294901760
        %887 = vmatpush1.msra.mxu0 %v886
        %888 = vmatprep.subr.mxu0 0.0
        %v889 = vand.u32 %v765, 4294901760
        %v890 = vsub.f32 %v765, %v889
        %v891 = vand.u32 %v890, 4294901760
        %v892 = vsub.f32 %v890, %v891
        %v893 = vand.u32 %v892, 4294901760
        %894 = vmatpush1.msra.mxu0 %v893
        %895 = vmatprep.subr.mxu0 0.0
        %v896 = vand.u32 %v764, 4294901760
        %v897 = vsub.f32 %v764, %v896
        %v898 = vand.u32 %v897, 4294901760
        %v899 = vsub.f32 %v897, %v898
        %v900 = vand.u32 %v899, 4294901760
        %901 = vmatpush1.msra.mxu0 %v900
        %902 = vmatprep.subr.mxu0 0.0
        %v903 = vand.u32 %v763, 4294901760
        %v904 = vsub.f32 %v763, %v903
        %v905 = vand.u32 %v904, 4294901760
        %v906 = vsub.f32 %v904, %v905
        %v907 = vand.u32 %v906, 4294901760
        %908 = vmatpush1.msra.mxu0 %v907
        %909 = vmatprep.subr.mxu0 0.0
        %910 = vmatpush2.msra.mxu0 0.0
        %911 = vmatprep.subr.mxu0 0.0
        %912 = vmatpush2.msra.mxu0 0.0
        %913 = vmatprep.subr.mxu0 0.0
        %914 = vmatpush2.msra.mxu0 0.0
        %915 = vmatprep.subr.mxu0 0.0
        %916 = vmatpush2.msra.mxu0 0.0
        %917 = vmatprep.subr.mxu0 0.0
        %918 = vmatpush2.msra.mxu0 0.0
        %919 = vmatprep.subr.mxu0 0.0
        %920 = vmatpush2.msra.mxu0 0.0
        %921 = vmatprep.subr.mxu0 0.0
        %922 = vmatpush2.msra.mxu0 0.0
        %923 = vmatprep.subr.mxu0 0.0
        %924 = vmatpush2.msra.mxu0 0.0
        %925 = vmatprep.subr.mxu0 0.0
        %926 = vmatpush2.msra.mxu0 0.0
        %927 = vmatprep.subr.mxu0 0.0
        %928 = vmatpush2.msra.mxu0 0.0
        %929 = vmatprep.subr.mxu0 0.0
        %930 = vmatpush2.msra.mxu0 0.0
        %931 = vmatprep.subr.mxu0 0.0
        %932 = vmatpush2.msra.mxu0 0.0
        %933 = vmatprep.subr.mxu0 0.0
        %934 = vmatpush2.msra.mxu0 0.0
        %935 = vmatprep.subr.mxu0 0.0
        %936 = vmatpush2.msra.mxu0 0.0
        %937 = vmatprep.subr.mxu0 0.0
        %938 = vmatpush2.msra.mxu0 0.0
        %939 = vmatprep.subr.mxu0 0.0
        %940 = vmatpush2.msra.mxu0 0.0
        %941 = vmatprep.mubr.f32.mxu0 0.0
        %v942 = vand.u32 %v776, 4294901760
        %943 = vmatmul.mubr.f32.gmra.mxu0 %v942
        %v944 = vpop.f32.mrf.mxu0
        %v945 = vadd.f32 %v854, %v944
        %v946 = vpop.f32.mrf.mxu0
        %947 = vdwg.mxu0
        %948 = vmatprep.subr.mxu0 0.0
        %949 = vmatpush1.msra.mxu0 0.0
        %950 = vmatprep.subr.mxu0 0.0
        %951 = vmatpush1.msra.mxu0 0.0
        %952 = vmatprep.subr.mxu0 0.0
        %953 = vmatpush1.msra.mxu0 0.0
        %954 = vmatprep.subr.mxu0 0.0
        %955 = vmatpush1.msra.mxu0 0.0
        %956 = vmatprep.subr.mxu0 0.0
        %957 = vmatpush1.msra.mxu0 0.0
        %958 = vmatprep.subr.mxu0 0.0
        %959 = vmatpush1.msra.mxu0 0.0
        %960 = vmatprep.subr.mxu0 0.0
        %961 = vmatpush1.msra.mxu0 0.0
        %962 = vmatprep.subr.mxu0 0.0
        %963 = vmatpush1.msra.mxu0 0.0
        %964 = vmatprep.subr.mxu0 0.0
        %965 = vmatpush1.msra.mxu0 0.0
        %966 = vmatprep.subr.mxu0 0.0
        %967 = vmatpush1.msra.mxu0 0.0
        %968 = vmatprep.subr.mxu0 0.0
        %969 = vmatpush1.msra.mxu0 0.0
        %970 = vmatprep.subr.mxu0 0.0
        %971 = vmatpush1.msra.mxu0 0.0
        %972 = vmatprep.subr.mxu0 0.0
        %v973 = vand.u32 %v766, 4294901760
        %v974 = vsub.f32 %v766, %v973
        %975 = vmatpush1.msra.mxu0 %v974
        %976 = vmatprep.subr.mxu0 0.0
        %v977 = vand.u32 %v765, 4294901760
        %v978 = vsub.f32 %v765, %v977
        %979 = vmatpush1.msra.mxu0 %v978
        %980 = vmatprep.subr.mxu0 0.0
        %v981 = vand.u32 %v764, 4294901760
        %v982 = vsub.f32 %v764, %v981
        %983 = vmatpush1.msra.mxu0 %v982
        %984 = vmatprep.subr.mxu0 0.0
        %v985 = vand.u32 %v763, 4294901760
        %v986 = vsub.f32 %v763, %v985
        %987 = vmatpush1.msra.mxu0 %v986
        %988 = vmatprep.subr.mxu0 0.0
        %989 = vmatpush2.msra.mxu0 0.0
        %990 = vmatprep.subr.mxu0 0.0
        %991 = vmatpush2.msra.mxu0 0.0
        %992 = vmatprep.subr.mxu0 0.0
        %993 = vmatpush2.msra.mxu0 0.0
        %994 = vmatprep.subr.mxu0 0.0
        %995 = vmatpush2.msra.mxu0 0.0
        %996 = vmatprep.subr.mxu0 0.0
        %997 = vmatpush2.msra.mxu0 0.0
        %998 = vmatprep.subr.mxu0 0.0
        %999 = vmatpush2.msra.mxu0 0.0
        %1000 = vmatprep.subr.mxu0 0.0
        %1001 = vmatpush2.msra.mxu0 0.0
        %1002 = vmatprep.subr.mxu0 0.0
        %1003 = vmatpush2.msra.mxu0 0.0
        %1004 = vmatprep.subr.mxu0 0.0
        %1005 = vmatpush2.msra.mxu0 0.0
        %1006 = vmatprep.subr.mxu0 0.0
        %1007 = vmatpush2.msra.mxu0 0.0
        %1008 = vmatprep.subr.mxu0 0.0
        %1009 = vmatpush2.msra.mxu0 0.0
        %1010 = vmatprep.subr.mxu0 0.0
        %1011 = vmatpush2.msra.mxu0 0.0
        %1012 = vmatprep.subr.mxu0 0.0
        %1013 = vmatpush2.msra.mxu0 0.0
        %1014 = vmatprep.subr.mxu0 0.0
        %1015 = vmatpush2.msra.mxu0 0.0
        %1016 = vmatprep.subr.mxu0 0.0
        %1017 = vmatpush2.msra.mxu0 0.0
        %1018 = vmatprep.subr.mxu0 0.0
        %1019 = vmatpush2.msra.mxu0 0.0
        %1020 = vmatprep.mubr.f32.mxu0 0.0
        %v1021 = vand.u32 %v776, 4294901760
        %v1022 = vsub.f32 %v776, %v1021
        %1023 = vmatmul.mubr.f32.gmra.mxu0 %v1022
        %v1024 = vpop.f32.mrf.mxu0
        %v1025 = vadd.f32 %v945, %v1024
        %v1026 = vpop.f32.mrf.mxu0
        %1027 = vdwg.mxu0
        %1028 = vmatprep.subr.mxu0 0.0
        %1029 = vmatpush1.msra.mxu0 0.0
        %1030 = vmatprep.subr.mxu0 0.0
        %1031 = vmatpush1.msra.mxu0 0.0
        %1032 = vmatprep.subr.mxu0 0.0
        %1033 = vmatpush1.msra.mxu0 0.0
        %1034 = vmatprep.subr.mxu0 0.0
        %1035 = vmatpush1.msra.mxu0 0.0
        %1036 = vmatprep.subr.mxu0 0.0
        %1037 = vmatpush1.msra.mxu0 0.0
        %1038 = vmatprep.subr.mxu0 0.0
        %1039 = vmatpush1.msra.mxu0 0.0
        %1040 = vmatprep.subr.mxu0 0.0
        %1041 = vmatpush1.msra.mxu0 0.0
        %1042 = vmatprep.subr.mxu0 0.0
        %1043 = vmatpush1.msra.mxu0 0.0
        %1044 = vmatprep.subr.mxu0 0.0
        %1045 = vmatpush1.msra.mxu0 0.0
        %1046 = vmatprep.subr.mxu0 0.0
        %1047 = vmatpush1.msra.mxu0 0.0
        %1048 = vmatprep.subr.mxu0 0.0
        %1049 = vmatpush1.msra.mxu0 0.0
        %1050 = vmatprep.subr.mxu0 0.0
        %1051 = vmatpush1.msra.mxu0 0.0
        %1052 = vmatprep.subr.mxu0 0.0
        %v1053 = vand.u32 %v766, 4294901760
        %1054 = vmatpush1.msra.mxu0 %v1053
        %1055 = vmatprep.subr.mxu0 0.0
        %v1056 = vand.u32 %v765, 4294901760
        %1057 = vmatpush1.msra.mxu0 %v1056
        %1058 = vmatprep.subr.mxu0 0.0
        %v1059 = vand.u32 %v764, 4294901760
        %1060 = vmatpush1.msra.mxu0 %v1059
        %1061 = vmatprep.subr.mxu0 0.0
        %v1062 = vand.u32 %v763, 4294901760
        %1063 = vmatpush1.msra.mxu0 %v1062
        %1064 = vmatprep.subr.mxu0 0.0
        %1065 = vmatpush2.msra.mxu0 0.0
        %1066 = vmatprep.subr.mxu0 0.0
        %1067 = vmatpush2.msra.mxu0 0.0
        %1068 = vmatprep.subr.mxu0 0.0
        %1069 = vmatpush2.msra.mxu0 0.0
        %1070 = vmatprep.subr.mxu0 0.0
        %1071 = vmatpush2.msra.mxu0 0.0
        %1072 = vmatprep.subr.mxu0 0.0
        %1073 = vmatpush2.msra.mxu0 0.0
        %1074 = vmatprep.subr.mxu0 0.0
        %1075 = vmatpush2.msra.mxu0 0.0
        %1076 = vmatprep.subr.mxu0 0.0
        %1077 = vmatpush2.msra.mxu0 0.0
        %1078 = vmatprep.subr.mxu0 0.0
        %1079 = vmatpush2.msra.mxu0 0.0
        %1080 = vmatprep.subr.mxu0 0.0
        %1081 = vmatpush2.msra.mxu0 0.0
        %1082 = vmatprep.subr.mxu0 0.0
        %1083 = vmatpush2.msra.mxu0 0.0
        %1084 = vmatprep.subr.mxu0 0.0
        %1085 = vmatpush2.msra.mxu0 0.0
        %1086 = vmatprep.subr.mxu0 0.0
        %1087 = vmatpush2.msra.mxu0 0.0
        %1088 = vmatprep.subr.mxu0 0.0
        %1089 = vmatpush2.msra.mxu0 0.0
        %1090 = vmatprep.subr.mxu0 0.0
        %1091 = vmatpush2.msra.mxu0 0.0
        %1092 = vmatprep.subr.mxu0 0.0
        %1093 = vmatpush2.msra.mxu0 0.0
        %1094 = vmatprep.subr.mxu0 0.0
        %1095 = vmatpush2.msra.mxu0 0.0
        %1096 = vmatprep.mubr.f32.mxu0 0.0
        %v1097 = vand.u32 %v776, 4294901760
        %v1098 = vsub.f32 %v776, %v1097
        %v1099 = vand.u32 %v1098, 4294901760
        %1100 = vmatmul.mubr.f32.gmra.mxu0 %v1099
        %v1101 = vpop.f32.mrf.mxu0
        %v1102 = vadd.f32 %v1025, %v1101
        %v1103 = vpop.f32.mrf.mxu0
        %1104 = vdwg.mxu0
        %1105 = vmatprep.subr.mxu0 0.0
        %1106 = vmatpush1.msra.mxu0 0.0
        %1107 = vmatprep.subr.mxu0 0.0
        %1108 = vmatpush1.msra.mxu0 0.0
        %1109 = vmatprep.subr.mxu0 0.0
        %1110 = vmatpush1.msra.mxu0 0.0
        %1111 = vmatprep.subr.mxu0 0.0
        %1112 = vmatpush1.msra.mxu0 0.0
        %1113 = vmatprep.subr.mxu0 0.0
        %1114 = vmatpush1.msra.mxu0 0.0
        %1115 = vmatprep.subr.mxu0 0.0
        %1116 = vmatpush1.msra.mxu0 0.0
        %1117 = vmatprep.subr.mxu0 0.0
        %1118 = vmatpush1.msra.mxu0 0.0
        %1119 = vmatprep.subr.mxu0 0.0
        %1120 = vmatpush1.msra.mxu0 0.0
        %1121 = vmatprep.subr.mxu0 0.0
        %1122 = vmatpush1.msra.mxu0 0.0
        %1123 = vmatprep.subr.mxu0 0.0
        %1124 = vmatpush1.msra.mxu0 0.0
        %1125 = vmatprep.subr.mxu0 0.0
        %1126 = vmatpush1.msra.mxu0 0.0
        %1127 = vmatprep.subr.mxu0 0.0
        %1128 = vmatpush1.msra.mxu0 0.0
        %1129 = vmatprep.subr.mxu0 0.0
        %v1130 = vand.u32 %v766, 4294901760
        %v1131 = vsub.f32 %v766, %v1130
        %v1132 = vand.u32 %v1131, 4294901760
        %1133 = vmatpush1.msra.mxu0 %v1132
        %1134 = vmatprep.subr.mxu0 0.0
        %v1135 = vand.u32 %v765, 4294901760
        %v1136 = vsub.f32 %v765, %v1135
        %v1137 = vand.u32 %v1136, 4294901760
        %1138 = vmatpush1.msra.mxu0 %v1137
        %1139 = vmatprep.subr.mxu0 0.0
        %v1140 = vand.u32 %v764, 4294901760
        %v1141 = vsub.f32 %v764, %v1140
        %v1142 = vand.u32 %v1141, 4294901760
        %1143 = vmatpush1.msra.mxu0 %v1142
        %1144 = vmatprep.subr.mxu0 0.0
        %v1145 = vand.u32 %v763, 4294901760
        %v1146 = vsub.f32 %v763, %v1145
        %v1147 = vand.u32 %v1146, 4294901760
        %1148 = vmatpush1.msra.mxu0 %v1147
        %1149 = vmatprep.subr.mxu0 0.0
        %1150 = vmatpush2.msra.mxu0 0.0
        %1151 = vmatprep.subr.mxu0 0.0
        %1152 = vmatpush2.msra.mxu0 0.0
        %1153 = vmatprep.subr.mxu0 0.0
        %1154 = vmatpush2.msra.mxu0 0.0
        %1155 = vmatprep.subr.mxu0 0.0
        %1156 = vmatpush2.msra.mxu0 0.0
        %1157 = vmatprep.subr.mxu0 0.0
        %1158 = vmatpush2.msra.mxu0 0.0
        %1159 = vmatprep.subr.mxu0 0.0
        %1160 = vmatpush2.msra.mxu0 0.0
        %1161 = vmatprep.subr.mxu0 0.0
        %1162 = vmatpush2.msra.mxu0 0.0
        %1163 = vmatprep.subr.mxu0 0.0
        %1164 = vmatpush2.msra.mxu0 0.0
        %1165 = vmatprep.subr.mxu0 0.0
        %1166 = vmatpush2.msra.mxu0 0.0
        %1167 = vmatprep.subr.mxu0 0.0
        %1168 = vmatpush2.msra.mxu0 0.0
        %1169 = vmatprep.subr.mxu0 0.0
        %1170 = vmatpush2.msra.mxu0 0.0
        %1171 = vmatprep.subr.mxu0 0.0
        %1172 = vmatpush2.msra.mxu0 0.0
        %1173 = vmatprep.subr.mxu0 0.0
        %1174 = vmatpush2.msra.mxu0 0.0
        %1175 = vmatprep.subr.mxu0 0.0
        %1176 = vmatpush2.msra.mxu0 0.0
        %1177 = vmatprep.subr.mxu0 0.0
        %1178 = vmatpush2.msra.mxu0 0.0
        %1179 = vmatprep.subr.mxu0 0.0
        %1180 = vmatpush2.msra.mxu0 0.0
        %1181 = vmatprep.mubr.f32.mxu0 0.0
        %v1182 = vand.u32 %v776, 4294901760
        %1183 = vmatmul.mubr.f32.gmra.mxu0 %v1182
        %v1184 = vpop.f32.mrf.mxu0
        %v1185 = vadd.f32 %v1102, %v1184
        %v1186 = vpop.f32.mrf.mxu0
        %1187 = vdwg.mxu0
        %1188 = vmatprep.subr.mxu0 0.0
        %1189 = vmatpush1.msra.mxu0 0.0
        %1190 = vmatprep.subr.mxu0 0.0
        %1191 = vmatpush1.msra.mxu0 0.0
        %1192 = vmatprep.subr.mxu0 0.0
        %1193 = vmatpush1.msra.mxu0 0.0
        %1194 = vmatprep.subr.mxu0 0.0
        %1195 = vmatpush1.msra.mxu0 0.0
        %1196 = vmatprep.subr.mxu0 0.0
        %1197 = vmatpush1.msra.mxu0 0.0
        %1198 = vmatprep.subr.mxu0 0.0
        %1199 = vmatpush1.msra.mxu0 0.0
        %1200 = vmatprep.subr.mxu0 0.0
        %1201 = vmatpush1.msra.mxu0 0.0
        %1202 = vmatprep.subr.mxu0 0.0
        %1203 = vmatpush1.msra.mxu0 0.0
        %1204 = vmatprep.subr.mxu0 0.0
        %1205 = vmatpush1.msra.mxu0 0.0
        %1206 = vmatprep.subr.mxu0 0.0
        %1207 = vmatpush1.msra.mxu0 0.0
        %1208 = vmatprep.subr.mxu0 0.0
        %1209 = vmatpush1.msra.mxu0 0.0
        %1210 = vmatprep.subr.mxu0 0.0
        %1211 = vmatpush1.msra.mxu0 0.0
        %1212 = vmatprep.subr.mxu0 0.0
        %v1213 = vand.u32 %v766, 4294901760
        %1214 = vmatpush1.msra.mxu0 %v1213
        %1215 = vmatprep.subr.mxu0 0.0
        %v1216 = vand.u32 %v765, 4294901760
        %1217 = vmatpush1.msra.mxu0 %v1216
        %1218 = vmatprep.subr.mxu0 0.0
        %v1219 = vand.u32 %v764, 4294901760
        %1220 = vmatpush1.msra.mxu0 %v1219
        %1221 = vmatprep.subr.mxu0 0.0
        %v1222 = vand.u32 %v763, 4294901760
        %1223 = vmatpush1.msra.mxu0 %v1222
        %1224 = vmatprep.subr.mxu0 0.0
        %1225 = vmatpush2.msra.mxu0 0.0
        %1226 = vmatprep.subr.mxu0 0.0
        %1227 = vmatpush2.msra.mxu0 0.0
        %1228 = vmatprep.subr.mxu0 0.0
        %1229 = vmatpush2.msra.mxu0 0.0
        %1230 = vmatprep.subr.mxu0 0.0
        %1231 = vmatpush2.msra.mxu0 0.0
        %1232 = vmatprep.subr.mxu0 0.0
        %1233 = vmatpush2.msra.mxu0 0.0
        %1234 = vmatprep.subr.mxu0 0.0
        %1235 = vmatpush2.msra.mxu0 0.0
        %1236 = vmatprep.subr.mxu0 0.0
        %1237 = vmatpush2.msra.mxu0 0.0
        %1238 = vmatprep.subr.mxu0 0.0
        %1239 = vmatpush2.msra.mxu0 0.0
        %1240 = vmatprep.subr.mxu0 0.0
        %1241 = vmatpush2.msra.mxu0 0.0
        %1242 = vmatprep.subr.mxu0 0.0
        %1243 = vmatpush2.msra.mxu0 0.0
        %1244 = vmatprep.subr.mxu0 0.0
        %1245 = vmatpush2.msra.mxu0 0.0
        %1246 = vmatprep.subr.mxu0 0.0
        %1247 = vmatpush2.msra.mxu0 0.0
        %1248 = vmatprep.subr.mxu0 0.0
        %1249 = vmatpush2.msra.mxu0 0.0
        %1250 = vmatprep.subr.mxu0 0.0
        %1251 = vmatpush2.msra.mxu0 0.0
        %1252 = vmatprep.subr.mxu0 0.0
        %1253 = vmatpush2.msra.mxu0 0.0
        %1254 = vmatprep.subr.mxu0 0.0
        %1255 = vmatpush2.msra.mxu0 0.0
        %1256 = vmatprep.mubr.f32.mxu0 0.0
        %v1257 = vand.u32 %v776, 4294901760
        %1258 = vmatmul.mubr.f32.gmra.mxu0 %v1257
        %v1259 = vpop.f32.mrf.mxu0
        %v1260 = vadd.f32 %v1185, %v1259
        %v1261 = vpop.f32.mrf.mxu0
        %1262 = vdwg.mxu0
        %v1263 = vmax.f32 %v1260, 0.0
        %v1264 = vld [vmem:[%s5] sm:$0xff]
        %v1265 = vld [vmem:[%s5 + $0x8] sm:$0xff]
        %v1266 = vld [vmem:[%s5 + $0x10] sm:$0xff]
        %v1267 = vld [vmem:[%s5 + $0x18] sm:$0xff]
        %v1268 = vld [vmem:[%s6] sm:$0x1]
        %v1270 = vlaneseq
        %v1271 = vshrl.u32 %v1270, 7
        %v1272 = vsub.s32 0, %v1271
        %v1273 = vrot.slane %v1268, %v1272
        %v1276 = vsel %vm774, %v1263, 0
        %1278 = vmatprep.subr.mxu0 0.0
        %1279 = vmatpush1.msra.mxu0 0.0
        %1280 = vmatprep.subr.mxu0 0.0
        %1281 = vmatpush1.msra.mxu0 0.0
        %1282 = vmatprep.subr.mxu0 0.0
        %1283 = vmatpush1.msra.mxu0 0.0
        %1284 = vmatprep.subr.mxu0 0.0
        %1285 = vmatpush1.msra.mxu0 0.0
        %1286 = vmatprep.subr.mxu0 0.0
        %1287 = vmatpush1.msra.mxu0 0.0
        %1288 = vmatprep.subr.mxu0 0.0
        %1289 = vmatpush1.msra.mxu0 0.0
        %1290 = vmatprep.subr.mxu0 0.0
        %1291 = vmatpush1.msra.mxu0 0.0
        %1292 = vmatprep.subr.mxu0 0.0
        %1293 = vmatpush1.msra.mxu0 0.0
        %1294 = vmatprep.subr.mxu0 0.0
        %1295 = vmatpush1.msra.mxu0 0.0
        %1296 = vmatprep.subr.mxu0 0.0
        %1297 = vmatpush1.msra.mxu0 0.0
        %1298 = vmatprep.subr.mxu0 0.0
        %1299 = vmatpush1.msra.mxu0 0.0
        %1300 = vmatprep.subr.mxu0 0.0
        %1301 = vmatpush1.msra.mxu0 0.0
        %1302 = vmatprep.subr.mxu0 0.0
        %v1303 = vand.u32 %v1267, 4294901760
        %1304 = vmatpush1.msra.mxu0 %v1303
        %1305 = vmatprep.subr.mxu0 0.0
        %v1306 = vand.u32 %v1266, 4294901760
        %1307 = vmatpush1.msra.mxu0 %v1306
        %1308 = vmatprep.subr.mxu0 0.0
        %v1309 = vand.u32 %v1265, 4294901760
        %1310 = vmatpush1.msra.mxu0 %v1309
        %1311 = vmatprep.subr.mxu0 0.0
        %v1312 = vand.u32 %v1264, 4294901760
        %1313 = vmatpush1.msra.mxu0 %v1312
        %1314 = vmatprep.subr.mxu0 0.0
        %1315 = vmatpush2.msra.mxu0 0.0
        %1316 = vmatprep.subr.mxu0 0.0
        %1317 = vmatpush2.msra.mxu0 0.0
        %1318 = vmatprep.subr.mxu0 0.0
        %1319 = vmatpush2.msra.mxu0 0.0
        %1320 = vmatprep.subr.mxu0 0.0
        %1321 = vmatpush2.msra.mxu0 0.0
        %1322 = vmatprep.subr.mxu0 0.0
        %1323 = vmatpush2.msra.mxu0 0.0
        %1324 = vmatprep.subr.mxu0 0.0
        %1325 = vmatpush2.msra.mxu0 0.0
        %1326 = vmatprep.subr.mxu0 0.0
        %1327 = vmatpush2.msra.mxu0 0.0
        %1328 = vmatprep.subr.mxu0 0.0
        %1329 = vmatpush2.msra.mxu0 0.0
        %1330 = vmatprep.subr.mxu0 0.0
        %1331 = vmatpush2.msra.mxu0 0.0
        %1332 = vmatprep.subr.mxu0 0.0
        %1333 = vmatpush2.msra.mxu0 0.0
        %1334 = vmatprep.subr.mxu0 0.0
        %1335 = vmatpush2.msra.mxu0 0.0
        %1336 = vmatprep.subr.mxu0 0.0
        %1337 = vmatpush2.msra.mxu0 0.0
        %1338 = vmatprep.subr.mxu0 0.0
        %1339 = vmatpush2.msra.mxu0 0.0
        %1340 = vmatprep.subr.mxu0 0.0
        %1341 = vmatpush2.msra.mxu0 0.0
        %1342 = vmatprep.subr.mxu0 0.0
        %1343 = vmatpush2.msra.mxu0 0.0
        %1344 = vmatprep.subr.mxu0 0.0
        %1345 = vmatpush2.msra.mxu0 0.0
        %1346 = vmatprep.mubr.f32.mxu0 0.0
        %v1347 = vand.u32 %v1276, 4294901760
        %v1348 = vsub.f32 %v1276, %v1347
        %v1349 = vand.u32 %v1348, 4294901760
        %v1350 = vsub.f32 %v1348, %v1349
        %v1351 = vand.u32 %v1350, 4294901760
        %1352 = vmatmul.mubr.f32.gmra.mxu0 %v1351
        %v1353 = vpop.f32.mrf.mxu0
        %v1354 = vadd.f32 %v1273, %v1353
        %v1355 = vpop.f32.mrf.mxu0
        %1356 = vdwg.mxu0
        %1357 = vmatprep.subr.mxu0 0.0
        %1358 = vmatpush1.msra.mxu0 0.0
        %1359 = vmatprep.subr.mxu0 0.0
        %1360 = vmatpush1.msra.mxu0 0.0
        %1361 = vmatprep.subr.mxu0 0.0
        %1362 = vmatpush1.msra.mxu0 0.0
        %1363 = vmatprep.subr.mxu0 0.0
        %1364 = vmatpush1.msra.mxu0 0.0
        %1365 = vmatprep.subr.mxu0 0.0
        %1366 = vmatpush1.msra.mxu0 0.0
        %1367 = vmatprep.subr.mxu0 0.0
        %1368 = vmatpush1.msra.mxu0 0.0
        %1369 = vmatprep.subr.mxu0 0.0
        %1370 = vmatpush1.msra.mxu0 0.0
        %1371 = vmatprep.subr.mxu0 0.0
        %1372 = vmatpush1.msra.mxu0 0.0
        %1373 = vmatprep.subr.mxu0 0.0
        %1374 = vmatpush1.msra.mxu0 0.0
        %1375 = vmatprep.subr.mxu0 0.0
        %1376 = vmatpush1.msra.mxu0 0.0
        %1377 = vmatprep.subr.mxu0 0.0
        %1378 = vmatpush1.msra.mxu0 0.0
        %1379 = vmatprep.subr.mxu0 0.0
        %1380 = vmatpush1.msra.mxu0 0.0
        %1381 = vmatprep.subr.mxu0 0.0
        %v1382 = vand.u32 %v1267, 4294901760
        %v1383 = vsub.f32 %v1267, %v1382
        %v1384 = vand.u32 %v1383, 4294901760
        %v1385 = vsub.f32 %v1383, %v1384
        %v1386 = vand.u32 %v1385, 4294901760
        %1387 = vmatpush1.msra.mxu0 %v1386
        %1388 = vmatprep.subr.mxu0 0.0
        %v1389 = vand.u32 %v1266, 4294901760
        %v1390 = vsub.f32 %v1266, %v1389
        %v1391 = vand.u32 %v1390, 4294901760
        %v1392 = vsub.f32 %v1390, %v1391
        %v1393 = vand.u32 %v1392, 4294901760
        %1394 = vmatpush1.msra.mxu0 %v1393
        %1395 = vmatprep.subr.mxu0 0.0
        %v1396 = vand.u32 %v1265, 4294901760
        %v1397 = vsub.f32 %v1265, %v1396
        %v1398 = vand.u32 %v1397, 4294901760
        %v1399 = vsub.f32 %v1397, %v1398
        %v1400 = vand.u32 %v1399, 4294901760
        %1401 = vmatpush1.msra.mxu0 %v1400
        %1402 = vmatprep.subr.mxu0 0.0
        %v1403 = vand.u32 %v1264, 4294901760
        %v1404 = vsub.f32 %v1264, %v1403
        %v1405 = vand.u32 %v1404, 4294901760
        %v1406 = vsub.f32 %v1404, %v1405
        %v1407 = vand.u32 %v1406, 4294901760
        %1408 = vmatpush1.msra.mxu0 %v1407
        %1409 = vmatprep.subr.mxu0 0.0
        %1410 = vmatpush2.msra.mxu0 0.0
        %1411 = vmatprep.subr.mxu0 0.0
        %1412 = vmatpush2.msra.mxu0 0.0
        %1413 = vmatprep.subr.mxu0 0.0
        %1414 = vmatpush2.msra.mxu0 0.0
        %1415 = vmatprep.subr.mxu0 0.0
        %1416 = vmatpush2.msra.mxu0 0.0
        %1417 = vmatprep.subr.mxu0 0.0
        %1418 = vmatpush2.msra.mxu0 0.0
        %1419 = vmatprep.subr.mxu0 0.0
        %1420 = vmatpush2.msra.mxu0 0.0
        %1421 = vmatprep.subr.mxu0 0.0
        %1422 = vmatpush2.msra.mxu0 0.0
        %1423 = vmatprep.subr.mxu0 0.0
        %1424 = vmatpush2.msra.mxu0 0.0
        %1425 = vmatprep.subr.mxu0 0.0
        %1426 = vmatpush2.msra.mxu0 0.0
        %1427 = vmatprep.subr.mxu0 0.0
        %1428 = vmatpush2.msra.mxu0 0.0
        %1429 = vmatprep.subr.mxu0 0.0
        %1430 = vmatpush2.msra.mxu0 0.0
        %1431 = vmatprep.subr.mxu0 0.0
        %1432 = vmatpush2.msra.mxu0 0.0
        %1433 = vmatprep.subr.mxu0 0.0
        %1434 = vmatpush2.msra.mxu0 0.0
        %1435 = vmatprep.subr.mxu0 0.0
        %1436 = vmatpush2.msra.mxu0 0.0
        %1437 = vmatprep.subr.mxu0 0.0
        %1438 = vmatpush2.msra.mxu0 0.0
        %1439 = vmatprep.subr.mxu0 0.0
        %1440 = vmatpush2.msra.mxu0 0.0
        %1441 = vmatprep.mubr.f32.mxu0 0.0
        %v1442 = vand.u32 %v1276, 4294901760
        %1443 = vmatmul.mubr.f32.gmra.mxu0 %v1442
        %v1444 = vpop.f32.mrf.mxu0
        %v1445 = vadd.f32 %v1354, %v1444
        %v1446 = vpop.f32.mrf.mxu0
        %1447 = vdwg.mxu0
        %1448 = vmatprep.subr.mxu0 0.0
        %1449 = vmatpush1.msra.mxu0 0.0
        %1450 = vmatprep.subr.mxu0 0.0
        %1451 = vmatpush1.msra.mxu0 0.0
        %1452 = vmatprep.subr.mxu0 0.0
        %1453 = vmatpush1.msra.mxu0 0.0
        %1454 = vmatprep.subr.mxu0 0.0
        %1455 = vmatpush1.msra.mxu0 0.0
        %1456 = vmatprep.subr.mxu0 0.0
        %1457 = vmatpush1.msra.mxu0 0.0
        %1458 = vmatprep.subr.mxu0 0.0
        %1459 = vmatpush1.msra.mxu0 0.0
        %1460 = vmatprep.subr.mxu0 0.0
        %1461 = vmatpush1.msra.mxu0 0.0
        %1462 = vmatprep.subr.mxu0 0.0
        %1463 = vmatpush1.msra.mxu0 0.0
        %1464 = vmatprep.subr.mxu0 0.0
        %1465 = vmatpush1.msra.mxu0 0.0
        %1466 = vmatprep.subr.mxu0 0.0
        %1467 = vmatpush1.msra.mxu0 0.0
        %1468 = vmatprep.subr.mxu0 0.0
        %1469 = vmatpush1.msra.mxu0 0.0
        %1470 = vmatprep.subr.mxu0 0.0
        %1471 = vmatpush1.msra.mxu0 0.0
        %1472 = vmatprep.subr.mxu0 0.0
        %v1473 = vand.u32 %v1267, 4294901760
        %v1474 = vsub.f32 %v1267, %v1473
        %1475 = vmatpush1.msra.mxu0 %v1474
        %1476 = vmatprep.subr.mxu0 0.0
        %v1477 = vand.u32 %v1266, 4294901760
        %v1478 = vsub.f32 %v1266, %v1477
        %1479 = vmatpush1.msra.mxu0 %v1478
        %1480 = vmatprep.subr.mxu0 0.0
        %v1481 = vand.u32 %v1265, 4294901760
        %v1482 = vsub.f32 %v1265, %v1481
        %1483 = vmatpush1.msra.mxu0 %v1482
        %1484 = vmatprep.subr.mxu0 0.0
        %v1485 = vand.u32 %v1264, 4294901760
        %v1486 = vsub.f32 %v1264, %v1485
        %1487 = vmatpush1.msra.mxu0 %v1486
        %1488 = vmatprep.subr.mxu0 0.0
        %1489 = vmatpush2.msra.mxu0 0.0
        %1490 = vmatprep.subr.mxu0 0.0
        %1491 = vmatpush2.msra.mxu0 0.0
        %1492 = vmatprep.subr.mxu0 0.0
        %1493 = vmatpush2.msra.mxu0 0.0
        %1494 = vmatprep.subr.mxu0 0.0
        %1495 = vmatpush2.msra.mxu0 0.0
        %1496 = vmatprep.subr.mxu0 0.0
        %1497 = vmatpush2.msra.mxu0 0.0
        %1498 = vmatprep.subr.mxu0 0.0
        %1499 = vmatpush2.msra.mxu0 0.0
        %1500 = vmatprep.subr.mxu0 0.0
        %1501 = vmatpush2.msra.mxu0 0.0
        %1502 = vmatprep.subr.mxu0 0.0
        %1503 = vmatpush2.msra.mxu0 0.0
        %1504 = vmatprep.subr.mxu0 0.0
        %1505 = vmatpush2.msra.mxu0 0.0
        %1506 = vmatprep.subr.mxu0 0.0
        %1507 = vmatpush2.msra.mxu0 0.0
        %1508 = vmatprep.subr.mxu0 0.0
        %1509 = vmatpush2.msra.mxu0 0.0
        %1510 = vmatprep.subr.mxu0 0.0
        %1511 = vmatpush2.msra.mxu0 0.0
        %1512 = vmatprep.subr.mxu0 0.0
        %1513 = vmatpush2.msra.mxu0 0.0
        %1514 = vmatprep.subr.mxu0 0.0
        %1515 = vmatpush2.msra.mxu0 0.0
        %1516 = vmatprep.subr.mxu0 0.0
        %1517 = vmatpush2.msra.mxu0 0.0
        %1518 = vmatprep.subr.mxu0 0.0
        %1519 = vmatpush2.msra.mxu0 0.0
        %1520 = vmatprep.mubr.f32.mxu0 0.0
        %v1521 = vand.u32 %v1276, 4294901760
        %v1522 = vsub.f32 %v1276, %v1521
        %1523 = vmatmul.mubr.f32.gmra.mxu0 %v1522
        %v1524 = vpop.f32.mrf.mxu0
        %v1525 = vadd.f32 %v1445, %v1524
        %v1526 = vpop.f32.mrf.mxu0
        %1527 = vdwg.mxu0
        %1528 = vmatprep.subr.mxu0 0.0
        %1529 = vmatpush1.msra.mxu0 0.0
        %1530 = vmatprep.subr.mxu0 0.0
        %1531 = vmatpush1.msra.mxu0 0.0
        %1532 = vmatprep.subr.mxu0 0.0
        %1533 = vmatpush1.msra.mxu0 0.0
        %1534 = vmatprep.subr.mxu0 0.0
        %1535 = vmatpush1.msra.mxu0 0.0
        %1536 = vmatprep.subr.mxu0 0.0
        %1537 = vmatpush1.msra.mxu0 0.0
        %1538 = vmatprep.subr.mxu0 0.0
        %1539 = vmatpush1.msra.mxu0 0.0
        %1540 = vmatprep.subr.mxu0 0.0
        %1541 = vmatpush1.msra.mxu0 0.0
        %1542 = vmatprep.subr.mxu0 0.0
        %1543 = vmatpush1.msra.mxu0 0.0
        %1544 = vmatprep.subr.mxu0 0.0
        %1545 = vmatpush1.msra.mxu0 0.0
        %1546 = vmatprep.subr.mxu0 0.0
        %1547 = vmatpush1.msra.mxu0 0.0
        %1548 = vmatprep.subr.mxu0 0.0
        %1549 = vmatpush1.msra.mxu0 0.0
        %1550 = vmatprep.subr.mxu0 0.0
        %1551 = vmatpush1.msra.mxu0 0.0
        %1552 = vmatprep.subr.mxu0 0.0
        %v1553 = vand.u32 %v1267, 4294901760
        %1554 = vmatpush1.msra.mxu0 %v1553
        %1555 = vmatprep.subr.mxu0 0.0
        %v1556 = vand.u32 %v1266, 4294901760
        %1557 = vmatpush1.msra.mxu0 %v1556
        %1558 = vmatprep.subr.mxu0 0.0
        %v1559 = vand.u32 %v1265, 4294901760
        %1560 = vmatpush1.msra.mxu0 %v1559
        %1561 = vmatprep.subr.mxu0 0.0
        %v1562 = vand.u32 %v1264, 4294901760
        %1563 = vmatpush1.msra.mxu0 %v1562
        %1564 = vmatprep.subr.mxu0 0.0
        %1565 = vmatpush2.msra.mxu0 0.0
        %1566 = vmatprep.subr.mxu0 0.0
        %1567 = vmatpush2.msra.mxu0 0.0
        %1568 = vmatprep.subr.mxu0 0.0
        %1569 = vmatpush2.msra.mxu0 0.0
        %1570 = vmatprep.subr.mxu0 0.0
        %1571 = vmatpush2.msra.mxu0 0.0
        %1572 = vmatprep.subr.mxu0 0.0
        %1573 = vmatpush2.msra.mxu0 0.0
        %1574 = vmatprep.subr.mxu0 0.0
        %1575 = vmatpush2.msra.mxu0 0.0
        %1576 = vmatprep.subr.mxu0 0.0
        %1577 = vmatpush2.msra.mxu0 0.0
        %1578 = vmatprep.subr.mxu0 0.0
        %1579 = vmatpush2.msra.mxu0 0.0
        %1580 = vmatprep.subr.mxu0 0.0
        %1581 = vmatpush2.msra.mxu0 0.0
        %1582 = vmatprep.subr.mxu0 0.0
        %1583 = vmatpush2.msra.mxu0 0.0
        %1584 = vmatprep.subr.mxu0 0.0
        %1585 = vmatpush2.msra.mxu0 0.0
        %1586 = vmatprep.subr.mxu0 0.0
        %1587 = vmatpush2.msra.mxu0 0.0
        %1588 = vmatprep.subr.mxu0 0.0
        %1589 = vmatpush2.msra.mxu0 0.0
        %1590 = vmatprep.subr.mxu0 0.0
        %1591 = vmatpush2.msra.mxu0 0.0
        %1592 = vmatprep.subr.mxu0 0.0
        %1593 = vmatpush2.msra.mxu0 0.0
        %1594 = vmatprep.subr.mxu0 0.0
        %1595 = vmatpush2.msra.mxu0 0.0
        %1596 = vmatprep.mubr.f32.mxu0 0.0
        %v1597 = vand.u32 %v1276, 4294901760
        %v1598 = vsub.f32 %v1276, %v1597
        %v1599 = vand.u32 %v1598, 4294901760
        %1600 = vmatmul.mubr.f32.gmra.mxu0 %v1599
        %v1601 = vpop.f32.mrf.mxu0
        %v1602 = vadd.f32 %v1525, %v1601
        %v1603 = vpop.f32.mrf.mxu0
        %1604 = vdwg.mxu0
        %1605 = vmatprep.subr.mxu0 0.0
        %1606 = vmatpush1.msra.mxu0 0.0
        %1607 = vmatprep.subr.mxu0 0.0
        %1608 = vmatpush1.msra.mxu0 0.0
        %1609 = vmatprep.subr.mxu0 0.0
        %1610 = vmatpush1.msra.mxu0 0.0
        %1611 = vmatprep.subr.mxu0 0.0
        %1612 = vmatpush1.msra.mxu0 0.0
        %1613 = vmatprep.subr.mxu0 0.0
        %1614 = vmatpush1.msra.mxu0 0.0
        %1615 = vmatprep.subr.mxu0 0.0
        %1616 = vmatpush1.msra.mxu0 0.0
        %1617 = vmatprep.subr.mxu0 0.0
        %1618 = vmatpush1.msra.mxu0 0.0
        %1619 = vmatprep.subr.mxu0 0.0
        %1620 = vmatpush1.msra.mxu0 0.0
        %1621 = vmatprep.subr.mxu0 0.0
        %1622 = vmatpush1.msra.mxu0 0.0
        %1623 = vmatprep.subr.mxu0 0.0
        %1624 = vmatpush1.msra.mxu0 0.0
        %1625 = vmatprep.subr.mxu0 0.0
        %1626 = vmatpush1.msra.mxu0 0.0
        %1627 = vmatprep.subr.mxu0 0.0
        %1628 = vmatpush1.msra.mxu0 0.0
        %1629 = vmatprep.subr.mxu0 0.0
        %v1630 = vand.u32 %v1267, 4294901760
        %v1631 = vsub.f32 %v1267, %v1630
        %v1632 = vand.u32 %v1631, 4294901760
        %1633 = vmatpush1.msra.mxu0 %v1632
        %1634 = vmatprep.subr.mxu0 0.0
        %v1635 = vand.u32 %v1266, 4294901760
        %v1636 = vsub.f32 %v1266, %v1635
        %v1637 = vand.u32 %v1636, 4294901760
        %1638 = vmatpush1.msra.mxu0 %v1637
        %1639 = vmatprep.subr.mxu0 0.0
        %v1640 = vand.u32 %v1265, 4294901760
        %v1641 = vsub.f32 %v1265, %v1640
        %v1642 = vand.u32 %v1641, 4294901760
        %1643 = vmatpush1.msra.mxu0 %v1642
        %1644 = vmatprep.subr.mxu0 0.0
        %v1645 = vand.u32 %v1264, 4294901760
        %v1646 = vsub.f32 %v1264, %v1645
        %v1647 = vand.u32 %v1646, 4294901760
        %1648 = vmatpush1.msra.mxu0 %v1647
        %1649 = vmatprep.subr.mxu0 0.0
        %1650 = vmatpush2.msra.mxu0 0.0
        %1651 = vmatprep.subr.mxu0 0.0
        %1652 = vmatpush2.msra.mxu0 0.0
        %1653 = vmatprep.subr.mxu0 0.0
        %1654 = vmatpush2.msra.mxu0 0.0
        %1655 = vmatprep.subr.mxu0 0.0
        %1656 = vmatpush2.msra.mxu0 0.0
        %1657 = vmatprep.subr.mxu0 0.0
        %1658 = vmatpush2.msra.mxu0 0.0
        %1659 = vmatprep.subr.mxu0 0.0
        %1660 = vmatpush2.msra.mxu0 0.0
        %1661 = vmatprep.subr.mxu0 0.0
        %1662 = vmatpush2.msra.mxu0 0.0
        %1663 = vmatprep.subr.mxu0 0.0
        %1664 = vmatpush2.msra.mxu0 0.0
        %1665 = vmatprep.subr.mxu0 0.0
        %1666 = vmatpush2.msra.mxu0 0.0
        %1667 = vmatprep.subr.mxu0 0.0
        %1668 = vmatpush2.msra.mxu0 0.0
        %1669 = vmatprep.subr.mxu0 0.0
        %1670 = vmatpush2.msra.mxu0 0.0
        %1671 = vmatprep.subr.mxu0 0.0
        %1672 = vmatpush2.msra.mxu0 0.0
        %1673 = vmatprep.subr.mxu0 0.0
        %1674 = vmatpush2.msra.mxu0 0.0
        %1675 = vmatprep.subr.mxu0 0.0
        %1676 = vmatpush2.msra.mxu0 0.0
        %1677 = vmatprep.subr.mxu0 0.0
        %1678 = vmatpush2.msra.mxu0 0.0
        %1679 = vmatprep.subr.mxu0 0.0
        %1680 = vmatpush2.msra.mxu0 0.0
        %1681 = vmatprep.mubr.f32.mxu0 0.0
        %v1682 = vand.u32 %v1276, 4294901760
        %1683 = vmatmul.mubr.f32.gmra.mxu0 %v1682
        %v1684 = vpop.f32.mrf.mxu0
        %v1685 = vadd.f32 %v1602, %v1684
        %v1686 = vpop.f32.mrf.mxu0
        %1687 = vdwg.mxu0
        %1688 = vmatprep.subr.mxu0 0.0
        %1689 = vmatpush1.msra.mxu0 0.0
        %1690 = vmatprep.subr.mxu0 0.0
        %1691 = vmatpush1.msra.mxu0 0.0
        %1692 = vmatprep.subr.mxu0 0.0
        %1693 = vmatpush1.msra.mxu0 0.0
        %1694 = vmatprep.subr.mxu0 0.0
        %1695 = vmatpush1.msra.mxu0 0.0
        %1696 = vmatprep.subr.mxu0 0.0
        %1697 = vmatpush1.msra.mxu0 0.0
        %1698 = vmatprep.subr.mxu0 0.0
        %1699 = vmatpush1.msra.mxu0 0.0
        %1700 = vmatprep.subr.mxu0 0.0
        %1701 = vmatpush1.msra.mxu0 0.0
        %1702 = vmatprep.subr.mxu0 0.0
        %1703 = vmatpush1.msra.mxu0 0.0
        %1704 = vmatprep.subr.mxu0 0.0
        %1705 = vmatpush1.msra.mxu0 0.0
        %1706 = vmatprep.subr.mxu0 0.0
        %1707 = vmatpush1.msra.mxu0 0.0
        %1708 = vmatprep.subr.mxu0 0.0
        %1709 = vmatpush1.msra.mxu0 0.0
        %1710 = vmatprep.subr.mxu0 0.0
        %1711 = vmatpush1.msra.mxu0 0.0
        %1712 = vmatprep.subr.mxu0 0.0
        %v1713 = vand.u32 %v1267, 4294901760
        %1714 = vmatpush1.msra.mxu0 %v1713
        %1715 = vmatprep.subr.mxu0 0.0
        %v1716 = vand.u32 %v1266, 4294901760
        %1717 = vmatpush1.msra.mxu0 %v1716
        %1718 = vmatprep.subr.mxu0 0.0
        %v1719 = vand.u32 %v1265, 4294901760
        %1720 = vmatpush1.msra.mxu0 %v1719
        %1721 = vmatprep.subr.mxu0 0.0
        %v1722 = vand.u32 %v1264, 4294901760
        %1723 = vmatpush1.msra.mxu0 %v1722
        %1724 = vmatprep.subr.mxu0 0.0
        %1725 = vmatpush2.msra.mxu0 0.0
        %1726 = vmatprep.subr.mxu0 0.0
        %1727 = vmatpush2.msra.mxu0 0.0
        %1728 = vmatprep.subr.mxu0 0.0
        %1729 = vmatpush2.msra.mxu0 0.0
        %1730 = vmatprep.subr.mxu0 0.0
        %1731 = vmatpush2.msra.mxu0 0.0
        %1732 = vmatprep.subr.mxu0 0.0
        %1733 = vmatpush2.msra.mxu0 0.0
        %1734 = vmatprep.subr.mxu0 0.0
        %1735 = vmatpush2.msra.mxu0 0.0
        %1736 = vmatprep.subr.mxu0 0.0
        %1737 = vmatpush2.msra.mxu0 0.0
        %1738 = vmatprep.subr.mxu0 0.0
        %1739 = vmatpush2.msra.mxu0 0.0
        %1740 = vmatprep.subr.mxu0 0.0
        %1741 = vmatpush2.msra.mxu0 0.0
        %1742 = vmatprep.subr.mxu0 0.0
        %1743 = vmatpush2.msra.mxu0 0.0
        %1744 = vmatprep.subr.mxu0 0.0
        %1745 = vmatpush2.msra.mxu0 0.0
        %1746 = vmatprep.subr.mxu0 0.0
        %1747 = vmatpush2.msra.mxu0 0.0
        %1748 = vmatprep.subr.mxu0 0.0
        %1749 = vmatpush2.msra.mxu0 0.0
        %1750 = vmatprep.subr.mxu0 0.0
        %1751 = vmatpush2.msra.mxu0 0.0
        %1752 = vmatprep.subr.mxu0 0.0
        %1753 = vmatpush2.msra.mxu0 0.0
        %1754 = vmatprep.subr.mxu0 0.0
        %1755 = vmatpush2.msra.mxu0 0.0
        %1756 = vmatprep.mubr.f32.mxu0 0.0
        %v1757 = vand.u32 %v1276, 4294901760
        %1758 = vmatmul.mubr.f32.gmra.mxu0 %v1757
        %v1759 = vpop.f32.mrf.mxu0
        %v1760 = vadd.f32 %v1685, %v1759
        %v1761 = vpop.f32.mrf.mxu0
        %1762 = vdwg.mxu0
        %v1763 = vtanh.pop %v1760
        %v1764 = vmax.f32 %v1760, -10.0
        %v1765 = vmin.f32 %v1764, 10.0
        %v1766 = vmul.f32 %v1765, 0.5
        %v1767 = vmul.f32 %v1766, 1.442695
        %v1768 = vpow.pop %v1767
        %1769 = vrot.lane.b32.xlu0 %v289, 120
        %v1770 = vpop.permute.xlu0 %1769
        %v1772 = vmul.f32 %v1768, %v1770
        %1774 = vrot.lane.b32.xlu0 %v1772, 120
        %v1775 = vpop.permute.xlu0 %1774
        %v1777 = vadd.f32 %v1763, %v1775
        %v1778 = vmax.f32 %v1777, -1.0
        %v1779 = vmin.f32 %v1778, 1.0
        %1781 = vrot.lane.b32.xlu0 %v1779, 16
        %v1782 = vpop.permute.xlu0 %1781
        %vm1784 = vcmask 64512
        %v1785 = vsel %vm1784, %v1763, %v1768
        %v1786 = vsel %vm299, %v1785, %v1782
        %vm1787 = vcmask 195584
        %1788 = vst.msk [vmem:[%s284] sm:$0xff] %vm1787, %v1786
        %s1789 = sand.u32 %s182, 1
        %s1790 = scalar_lea.sflag [#allocation4], %s1789
        %s1791 = sand.u32 %s182, 1
        %s1792 = smul.addr %s1791, 8
        %s1793 = scalar_lea.vmem [#allocation5], %s1792
        // Predicated region
        $region53: #{tpu_custom_call.1} parent=47 // pred_check
          %p1794 = pneg %p192
        $region54: #{tpu_custom_call.1} parent=47 // pred_check_branch
          %1796 = sbr.rel (%p1794) target = $region56
        $region55: #{tpu_custom_call.1} parent=47 // pred_region
          %s1798 = ssub.s32 128, 128
          %1799 = vsyncadd %s1790, %s1798
          %s1800 = smul.addr %s22, 128
          %s1801 = scalar_lea.hbm %s7, %s1800
          %s1803 = sshll.u32 %s1793, 4
          %s1804 = int_to_ptr.vmem [resolvable:$true] %s1803
          %1806 = dma.vmem_to_hbm [thread:$0]  %s1804, 128, %s1801, %s1790
        $region56: #{tpu_custom_call.1} parent=47 // pred_fallthru
          _
      $region48: #{tpu_custom_call.1} parent=5 // pred_fallthru
        _
      %p1807 = scmp.le.s32.totalorder 2, %s17
      // Predicated region
      $region57: #{tpu_custom_call.1} parent=5 // pred_check
        %p1808 = pneg %p1807
      $region58: #{tpu_custom_call.1} parent=5 // pred_check_branch
        %1810 = sbr.rel (%p1808) target = $region60
      $region59: #{tpu_custom_call.1} parent=5 // pred_region
        %s1811 = ssub.s32 %s17, 2
        // Predicated region
        $region61: #{tpu_custom_call.1} parent=59 // pred_check
          %p1812 = pneg %p198
        $region62: #{tpu_custom_call.1} parent=59 // pred_check_branch
          %1814 = sbr.rel (%p1812) target = $region64
        $region63: #{tpu_custom_call.1} parent=59 // pred_region
          %s1815 = sand.u32 %s183, 1
          %s1816 = scalar_lea.sflag [#allocation4], %s1815
          %s1817 = sand.u32 %s183, 1
          %s1818 = smul.addr %s1817, 8
          %s1819 = scalar_lea.vmem [#allocation5], %s1818
          %1820 = dma.done %s1816, 128
        $region64: #{tpu_custom_call.1} parent=59 // pred_fallthru
          _
      $region60: #{tpu_custom_call.1} parent=5 // pred_fallthru
        _
    $region6: #{tpu_custom_call.1} parent=1 // loop_footer
      %s21 = sadd.s32 1, %s17
    $region7: #{tpu_custom_call.1} parent=1 // loop_footer_branch
      %16 = sbr.rel target = $region3
    $region8: #{tpu_custom_call.1} parent=1 // loop_exit
      _
    %1821 = vsyncpa [#allocation3], 1
    %s1822 = scalar_lea.sflag [#allocation3], 1
    %1823 = vsyncpa %s1822, 1
    %1824 = vsyncpa [#allocation4], 1
    %s1825 = scalar_lea.sflag [#allocation4], 1
    %1826 = vsyncpa %s1825, 1

</llo_original>
